<compile_context>
chip_gen: v7x
topology: tpu7x:2x2x1
jax: 0.10.0
libtpu: 0.0.40
codegen_flags: <defaults>
</compile_context>

<pallas_src>
import functools

import jax
import jax.numpy as jnp
from jax.experimental import pallas as pl
from jax.experimental.pallas import tpu as pltpu


def _round_up(x, m):
    return (x + m - 1) // m * m


def _pick_token_tile(T):
    """Return (tt, T_pad).

    tt is a multiple of 8, preferring 256 (one MXU M pass on v6e/v7x, also fine
    for v5e's 128-wide MXU) and never exceeding 256 so the f32 (tt, Dp)
    activation intermediates stay small (v5e single vst slot / v7x 64 MiB VMEM).
    T is padded up to a multiple of tt; padded rows are masked in-kernel.
    """
    if T <= 256:
        tt = max(8, _round_up(T, 8))
        return tt, tt
    best = None
    for tt in (256, 128):                      # prefer 256, fall back if it pads more
        tp = _round_up(T, tt)
        key = (tp, -tt)
        if best is None or key < best[0]:
            best = (key, tt, tp)
    return best[1], best[2]


# -----------------------------------------------------------------------------
# Fused kernel.  Per (b, t) grid step:
#   emb  = patches_tile @ W_embed + b_embed       (MXU, bf16 in / f32 acc)
#   feat = gelu(emb @ W_enc + b_enc)              (MXU + VPU/EUP, f32)
#   acc(8,Dp) += 8-row partial sums of feat       (VPU vreg adds, no XLU)
# At the last t for this batch:
#   pooled    = sublane-reduce(acc) * (1/T)       (one XLU reduce per batch)
#   logits[b] = pooled_bf16 @ W_head_bf16 + b_head
# -----------------------------------------------------------------------------
def _fullmodel_kernel(p_ref, we_ref, be_ref, wc_ref, bc_ref, wh_ref, bh_ref,
                      o_ref, acc_ref, *, inv_t, tt, t_valid):
    t = pl.program_id(1)

    @pl.when(t == 0)
    def _():
        acc_ref[...] = jnp.zeros_like(acc_ref)

    x = p_ref[0]                                               # (tt, Kp) bf16
    emb = jnp.dot(x, we_ref[...],
                  preferred_element_type=jnp.float32) + be_ref[...]
    h = jnp.dot(emb.astype(jnp.bfloat16), wc_ref[...],
                preferred_element_type=jnp.float32) + bc_ref[...]
    # TODO(synk): PyTorch nn.GELU defaults to the exact erf form; tanh approx
    # is used here (portable Mosaic lowering), ~1e-3-level difference.
    feat = jax.nn.gelu(h, approximate=True)                    # (tt, Dp) f32

    if t_valid is not None:
        # T was zero-padded; padded rows still get bias-fed GELU output, so
        # mask them out of the pooled sum to keep the mean exact.
        row = t * tt + jax.lax.broadcasted_iota(jnp.int32, feat.shape, 0)
        feat = jnp.where(row < t_valid, feat, 0.0)

    # 8-row partial sums: plain VPU adds across vregs each step; defer the
    # single cross-sublane (XLU) reduce to the epilogue.
    acc_ref[...] += jnp.sum(feat.reshape(tt // 8, 8, feat.shape[-1]), axis=0)

    @pl.when(t == pl.num_programs(1) - 1)
    def _():
        pooled = jnp.sum(acc_ref[...], axis=0, keepdims=True) * jnp.float32(inv_t)
        # bf16 feeds for the (1, Dp) x (Dp, Cp) head matmul: f32 MXU matmuls
        # decompose into multi-pass bf16 anyway; accumulation stays f32.
        logits = jnp.dot(pooled.astype(jnp.bfloat16), wh_ref[...],
                         preferred_element_type=jnp.float32) + bh_ref[...]
        o_ref[0] = logits.astype(o_ref.dtype)                  # (1, Cp)


def full_model_forward(x, params, *, patch):
    """x: (B, C, H, W) float32 (NCHW, same as PyTorch). Returns (B, num_classes)."""
    B, C, H, W = x.shape
    P = patch
    Th, Tw = H // P, W // P
    T = Th * Tw
    K = C * P * P
    D = params["w_embed"].shape[1]
    NC = params["w_head"].shape[1]

    Kp = _round_up(K, 128)
    Dp = _round_up(D, 128)
    Cp = _round_up(NC, 128)
    tt, Tp = _pick_token_tile(T)
    n_t = Tp // tt

    # --- layout glue (XLA pre-pass): non-overlapping patch extraction
    #     (== conv with kernel=stride=P), zero-pad to lane-dense shapes, bf16.
    #     Note: one extra HBM round-trip of the input; for small-D bandwidth-
    #     bound models it could be folded in-kernel via an NHWC per-patch-row
    #     BlockSpec (not done here).
    patches = x.reshape(B, C, Th, P, Tw, P)
    patches = jnp.transpose(patches, (0, 2, 4, 1, 3, 5)).reshape(B, T, K)
    patches = jnp.pad(patches,
                      ((0, 0), (0, Tp - T), (0, Kp - K))).astype(jnp.bfloat16)

    we = jnp.pad(params["w_embed"], ((0, Kp - K), (0, Dp - D))).astype(jnp.bfloat16)
    be = jnp.pad(params["b_embed"], (0, Dp - D)).reshape(1, Dp).astype(jnp.float32)
    wc = jnp.pad(params["w_enc"], ((0, Dp - D), (0, Dp - D))).astype(jnp.bfloat16)
    bc = jnp.pad(params["b_enc"], (0, Dp - D)).reshape(1, Dp).astype(jnp.float32)
    wh = jnp.pad(params["w_head"], ((0, Dp - D), (0, Cp - NC))).astype(jnp.bfloat16)
    bh = jnp.pad(params["b_head"], (0, Cp - NC)).reshape(1, Cp).astype(jnp.float32)

    # --- VMEM budget from actual buffer sizes (v7x: only 64 MiB per TC) -------
    need = (2 * tt * Kp * 2                        # double-buffered patch tile
            + (Kp * Dp + Dp * Dp + Dp * Cp) * 2    # bf16 weights (single-buffered)
            + (2 * Dp + Cp) * 4 + 2 * Cp * 4       # biases + output blocks
            + 8 * Dp * 4                           # accumulator scratch
            + 3 * tt * Dp * 4)                     # emb/h/feat compiler scratch
    vmem_limit = int(min(max(2 * need, 16 << 20), 40 << 20))

    flops = 2 * B * Tp * (Kp * Dp + Dp * Dp) + 2 * B * Dp * Cp
    bytes_accessed = (patches.size * 2 + we.size * 2 + wc.size * 2 + wh.size * 2
                      + (be.size + bc.size + bh.size) * 4 + B * Cp * 4)
    cost = pl.CostEstimate(flops=flops, transcendentals=B * Tp * Dp,
                           bytes_accessed=bytes_accessed)

    kernel = functools.partial(_fullmodel_kernel, inv_t=1.0 / T, tt=tt,
                               t_valid=(T if Tp != T else None))

    def const_spec(shape, single_buffer):
        idx = lambda b, t: (0, 0)
        if single_buffer:
            # Constant index_map -> double-buffering buys nothing; single-buffer.
            return pl.BlockSpec(shape, idx, pipeline_mode=pl.Buffered(1))
        return pl.BlockSpec(shape, idx)

    def build(single_buffer_weights):
        return pl.pallas_call(
            kernel,
            out_shape=jax.ShapeDtypeStruct((B, 1, Cp), jnp.float32),
            grid_spec=pltpu.PrefetchScalarGridSpec(
                num_scalar_prefetch=0,
                grid=(B, n_t),   # batch "parallel" (2 TCs on v7x when B>=2)
                in_specs=[
                    pl.BlockSpec((1, tt, Kp), lambda b, t: (b, t, 0)),   # patches
                    const_spec((Kp, Dp), single_buffer_weights),         # w_embed
                    const_spec((1, Dp), single_buffer_weights),          # b_embed
                    const_spec((Dp, Dp), single_buffer_weights),         # w_enc
                    const_spec((1, Dp), single_buffer_weights),          # b_enc
                    const_spec((Dp, Cp), single_buffer_weights),         # w_head
                    const_spec((1, Cp), single_buffer_weights),          # b_head
                ],
                out_specs=pl.BlockSpec((1, 1, Cp), lambda b, t: (b, 0, 0)),
                scratch_shapes=[pltpu.VMEM((8, Dp), jnp.float32)],
            ),
            compiler_params=pltpu.CompilerParams(
                dimension_semantics=("parallel", "arbitrary"),
                vmem_limit_bytes=vmem_limit,
            ),
            cost_estimate=cost,
        )

    args = (patches, we, be, wc, bc, wh, bh)
    try:
        out = build(True)(*args)
    except Exception:
        # This jax/Mosaic version rejected pl.Buffered(1): fall back to default
        # double-buffering (identical semantics, only VMEM footprint differs).
        out = build(False)(*args)

    return out[:, 0, :NC]                                       # (B, num_classes)


def init_params(key, *, in_ch, patch, dim, num_classes):
    patch_dim = in_ch * patch * patch
    k = jax.random.split(key, 3)
    return {
        "w_embed": jax.random.normal(k[0], (patch_dim, dim), jnp.float32)
                   * (patch_dim ** -0.5),
        "b_embed": jnp.zeros((dim,), jnp.float32),
        "w_enc":   jax.random.normal(k[1], (dim, dim), jnp.float32) * (dim ** -0.5),
        "b_enc":   jnp.zeros((dim,), jnp.float32),
        "w_head":  jax.random.normal(k[2], (dim, num_classes), jnp.float32)
                   * (dim ** -0.5),
        "b_head":  jnp.zeros((num_classes,), jnp.float32),
    }


if __name__ == "__main__":
    key = jax.random.PRNGKey(0)
    B, C, H, W = 2, 4, 16, 16
    PATCH, DIM, NCLS = 4, 32, 8

    kx, kp = jax.random.split(key)
    x = jax.random.normal(kx, (B, C, H, W), jnp.float32)
    params = init_params(kp, in_ch=C, patch=PATCH, dim=DIM, num_classes=NCLS)

    out = full_model_forward(x, params, patch=PATCH)
    jax.block_until_ready(out)
    assert out.shape == (B, NCLS), out.shape

    # pure-JAX f32 reference (kernel feeds the MXU bf16 -> loosened tolerance)
    Th, Tw = H // PATCH, W // PATCH
    p = jnp.transpose(x.reshape(B, C, Th, PATCH, Tw, PATCH),
                      (0, 2, 4, 1, 3, 5)).reshape(B * Th * Tw, -1)
    emb = p @ params["w_embed"] + params["b_embed"]
    feat = jax.nn.gelu(emb @ params["w_enc"] + params["b_enc"], approximate=True)
    ref = (feat.reshape(B, Th * Tw, DIM).mean(axis=1) @ params["w_head"]
           + params["b_head"])
    err = float(jnp.max(jnp.abs(out - ref)))
    assert jnp.allclose(out, ref, atol=5e-2, rtol=5e-2), err

    print("KERNEL_OK")
</pallas_src>

<mosaic_0001>
module attributes {stable_mosaic.version = 11 : i64} {
  func.func @_fullmodel_kernel(%arg0: i32, %arg1: i32, %arg2: memref<1x16x128xbf16, #tpu.memory_space<vmem>>, %arg3: memref<128x128xbf16, #tpu.memory_space<vmem>>, %arg4: memref<1x128xf32, #tpu.memory_space<vmem>>, %arg5: memref<128x128xbf16, #tpu.memory_space<vmem>>, %arg6: memref<1x128xf32, #tpu.memory_space<vmem>>, %arg7: memref<128x128xbf16, #tpu.memory_space<vmem>>, %arg8: memref<1x128xf32, #tpu.memory_space<vmem>>, %arg9: memref<1x1x128xf32, #tpu.memory_space<vmem>>, %arg10: memref<8x128xf32, #tpu.memory_space<vmem>>) attributes {dimension_semantics = [#tpu.dimension_semantics<parallel>, #tpu.dimension_semantics<arbitrary>], iteration_bounds = array<i64: 2, 1>, scalar_prefetch = 0 : i64, scratch_operands = 1 : i64, tpu.core_type = #tpu.core_type<tc>, window_params = [{transform_indices = @transform_0, window_bounds = array<i64: 1, 16, 128>}, {pipeline_mode = #tpu.pipeline_mode<synchronous>, transform_indices = @transform_1, window_bounds = array<i64: 128, 128>}, {pipeline_mode = #tpu.pipeline_mode<synchronous>, transform_indices = @transform_2, window_bounds = array<i64: 1, 128>}, {pipeline_mode = #tpu.pipeline_mode<synchronous>, transform_indices = @transform_3, window_bounds = array<i64: 128, 128>}, {pipeline_mode = #tpu.pipeline_mode<synchronous>, transform_indices = @transform_4, window_bounds = array<i64: 1, 128>}, {pipeline_mode = #tpu.pipeline_mode<synchronous>, transform_indices = @transform_5, window_bounds = array<i64: 128, 128>}, {pipeline_mode = #tpu.pipeline_mode<synchronous>, transform_indices = @transform_6, window_bounds = array<i64: 1, 128>}, {transform_indices = @transform_7, window_bounds = array<i64: 1, 1, 128>}]} {
    %c0_i32 = arith.constant 0 : i32
    %0 = arith.cmpi eq, %arg1, %c0_i32 : i32
    %1 = arith.extui %0 : i1 to i32
    %c0_i32_0 = arith.constant 0 : i32
    %2 = arith.cmpi ne, %1, %c0_i32_0 : i32
    scf.if %2 {
      %cst_23 = arith.constant 0.000000e+00 : f32
      %37 = vector.broadcast %cst_23 : f32 to vector<8x128xf32>
      %c0_24 = arith.constant 0 : index
      %c0_25 = arith.constant 0 : index
      %38 = vector.load %arg10[%c0_24, %c0_25] : memref<8x128xf32, #tpu.memory_space<vmem>>, vector<8x128xf32>
      tpu.vector_store %arg10[%c0_24, %c0_25], %37 {strides = array<i32>} : memref<8x128xf32, #tpu.memory_space<vmem>>, vector<8x128xf32>,
    } else {
    }
    %c0 = arith.constant 0 : index
    %c0_1 = arith.constant 0 : index
    %c0_2 = arith.constant 0 : index
    %3 = vector.load %arg2[%c0, %c0_1, %c0_2] : memref<1x16x128xbf16, #tpu.memory_space<vmem>>, vector<1x16x128xbf16>
    %4 = vector.shape_cast %3 : vector<1x16x128xbf16> to vector<16x128xbf16>
    %c0_3 = arith.constant 0 : index
    %c0_4 = arith.constant 0 : index
    %5 = vector.load %arg3[%c0_3, %c0_4] : memref<128x128xbf16, #tpu.memory_space<vmem>>, vector<128x128xbf16>
    %cst = arith.constant dense<0.000000e+00> : vector<16x128xf32>
    %6 = tpu.matmul %4, %5, %cst {dimension_numbers = #tpu.dot_dimension_numbers<[1], [0], [0], [1], [0, 0, 1, 1], [], []>} : vector<16x128xbf16>, vector<128x128xbf16>, vector<16x128xf32> -> vector<16x128xf32>
    %c0_5 = arith.constant 0 : index
    %c0_6 = arith.constant 0 : index
    %7 = vector.load %arg4[%c0_5, %c0_6] : memref<1x128xf32, #tpu.memory_space<vmem>>, vector<1x128xf32>
    %8 = vector.broadcast %7 : vector<1x128xf32> to vector<16x128xf32>
    %9 = arith.addf %6, %8 : vector<16x128xf32>
    %10 = arith.truncf %9 : vector<16x128xf32> to vector<16x128xbf16>
    %c0_7 = arith.constant 0 : index
    %c0_8 = arith.constant 0 : index
    %11 = vector.load %arg5[%c0_7, %c0_8] : memref<128x128xbf16, #tpu.memory_space<vmem>>, vector<128x128xbf16>
    %cst_9 = arith.constant dense<0.000000e+00> : vector<16x128xf32>
    %12 = tpu.matmul %10, %11, %cst_9 {dimension_numbers = #tpu.dot_dimension_numbers<[1], [0], [0], [1], [0, 0, 1, 1], [], []>} : vector<16x128xbf16>, vector<128x128xbf16>, vector<16x128xf32> -> vector<16x128xf32>
    %c0_10 = arith.constant 0 : index
    %c0_11 = arith.constant 0 : index
    %13 = vector.load %arg6[%c0_10, %c0_11] : memref<1x128xf32, #tpu.memory_space<vmem>>, vector<1x128xf32>
    %14 = vector.broadcast %13 : vector<1x128xf32> to vector<16x128xf32>
    %15 = arith.addf %12, %14 : vector<16x128xf32>
    %16 = arith.mulf %15, %15 : vector<16x128xf32>
    %17 = arith.mulf %15, %16 : vector<16x128xf32>
    %cst_12 = arith.constant 4.471500e-02 : f32
    %18 = vector.broadcast %cst_12 : f32 to vector<16x128xf32>
    %19 = arith.mulf %18, %17 : vector<16x128xf32>
    %20 = arith.addf %15, %19 : vector<16x128xf32>
    %cst_13 = arith.constant 0.797884583 : f32
    %21 = vector.broadcast %cst_13 : f32 to vector<16x128xf32>
    %22 = arith.mulf %21, %20 : vector<16x128xf32>
    %23 = math.tanh %22 : vector<16x128xf32>
    %cst_14 = arith.constant 1.000000e+00 : f32
    %24 = vector.broadcast %cst_14 : f32 to vector<16x128xf32>
    %25 = arith.addf %24, %23 : vector<16x128xf32>
    %cst_15 = arith.constant 5.000000e-01 : f32
    %26 = vector.broadcast %cst_15 : f32 to vector<16x128xf32>
    %27 = arith.mulf %26, %25 : vector<16x128xf32>
    %28 = arith.mulf %15, %27 : vector<16x128xf32>
    %c0_16 = arith.constant 0 : index
    %c0_17 = arith.constant 0 : index
    %29 = vector.load %arg10[%c0_16, %c0_17] : memref<8x128xf32, #tpu.memory_space<vmem>>, vector<8x128xf32>
    %30 = vector.shape_cast %28 : vector<16x128xf32> to vector<2x8x128xf32>
    %cst_18 = arith.constant dense<0.000000e+00> : vector<8x128xf32>
    %31 = vector.multi_reduction <add>, %30, %cst_18 [0] : vector<2x8x128xf32> to vector<8x128xf32>
    %32 = arith.addf %29, %31 : vector<8x128xf32>
    %c0_19 = arith.constant 0 : index
    %c0_20 = arith.constant 0 : index
    %33 = vector.load %arg10[%c0_19, %c0_20] : memref<8x128xf32, #tpu.memory_space<vmem>>, vector<8x128xf32>
    tpu.vector_store %arg10[%c0_19, %c0_20], %32 {strides = array<i32>} : memref<8x128xf32, #tpu.memory_space<vmem>>, vector<8x128xf32>,
    %c0_i32_21 = arith.constant 0 : i32
    %34 = arith.cmpi eq, %arg1, %c0_i32_21 : i32
    %35 = arith.extui %34 : i1 to i32
    %c0_i32_22 = arith.constant 0 : i32
    %36 = arith.cmpi ne, %35, %c0_i32_22 : i32
    scf.if %36 {
      %c0_23 = arith.constant 0 : index
      %c0_24 = arith.constant 0 : index
      %37 = vector.load %arg10[%c0_23, %c0_24] : memref<8x128xf32, #tpu.memory_space<vmem>>, vector<8x128xf32>
      %cst_25 = arith.constant dense<0.000000e+00> : vector<128xf32>
      %38 = vector.multi_reduction <add>, %37, %cst_25 [0] : vector<8x128xf32> to vector<128xf32>
      %39 = vector.shape_cast %38 : vector<128xf32> to vector<1x128xf32>
      %cst_26 = arith.constant 6.250000e-02 : f32
      %40 = vector.broadcast %cst_26 : f32 to vector<1x128xf32>
      %41 = arith.mulf %39, %40 : vector<1x128xf32>
      %42 = arith.truncf %41 : vector<1x128xf32> to vector<1x128xbf16>
      %c0_27 = arith.constant 0 : index
      %c0_28 = arith.constant 0 : index
      %43 = vector.load %arg7[%c0_27, %c0_28] : memref<128x128xbf16, #tpu.memory_space<vmem>>, vector<128x128xbf16>
      %cst_29 = arith.constant dense<0.000000e+00> : vector<1x128xf32>
      %44 = tpu.matmul %42, %43, %cst_29 {dimension_numbers = #tpu.dot_dimension_numbers<[1], [0], [0], [1], [0, 0, 1, 1], [], []>} : vector<1x128xbf16>, vector<128x128xbf16>, vector<1x128xf32> -> vector<1x128xf32>
      %c0_30 = arith.constant 0 : index
      %c0_31 = arith.constant 0 : index
      %45 = vector.load %arg8[%c0_30, %c0_31] : memref<1x128xf32, #tpu.memory_space<vmem>>, vector<1x128xf32>
      %46 = arith.addf %44, %45 : vector<1x128xf32>
      %c0_32 = arith.constant 0 : index
      %c0_33 = arith.constant 0 : index
      %c0_34 = arith.constant 0 : index
      %47 = vector.load %arg9[%c0_32, %c0_33, %c0_34] : memref<1x1x128xf32, #tpu.memory_space<vmem>>, vector<1x1x128xf32>
      %48 = vector.shape_cast %47 : vector<1x1x128xf32> to vector<1x128xf32>
      %49 = vector.shape_cast %46 : vector<1x128xf32> to vector<1x1x128xf32>
      tpu.vector_store %arg9[%c0_32, %c0_33, %c0_34], %49 {strides = array<i32>} : memref<1x1x128xf32, #tpu.memory_space<vmem>>, vector<1x1x128xf32>,
    } else {
    }
    return
  }
  func.func @transform_0(%arg0: i32, %arg1: i32) -> (i32, i32, i32) {
    %c0_i32 = arith.constant 0 : i32
    %c0_i32_0 = arith.constant 0 : i32
    return %arg0, %arg1, %c0_i32 : i32, i32, i32
  }
  func.func @transform_1(%arg0: i32, %arg1: i32) -> (i32, i32) {
    %c0_i32 = arith.constant 0 : i32
    %c0_i32_0 = arith.constant 0 : i32
    %c0_i32_1 = arith.constant 0 : i32
    return %c0_i32, %c0_i32_0 : i32, i32
  }
  func.func @transform_2(%arg0: i32, %arg1: i32) -> (i32, i32) {
    %c0_i32 = arith.constant 0 : i32
    %c0_i32_0 = arith.constant 0 : i32
    %c0_i32_1 = arith.constant 0 : i32
    return %c0_i32, %c0_i32_0 : i32, i32
  }
  func.func @transform_3(%arg0: i32, %arg1: i32) -> (i32, i32) {
    %c0_i32 = arith.constant 0 : i32
    %c0_i32_0 = arith.constant 0 : i32
    %c0_i32_1 = arith.constant 0 : i32
    return %c0_i32, %c0_i32_0 : i32, i32
  }
  func.func @transform_4(%arg0: i32, %arg1: i32) -> (i32, i32) {
    %c0_i32 = arith.constant 0 : i32
    %c0_i32_0 = arith.constant 0 : i32
    %c0_i32_1 = arith.constant 0 : i32
    return %c0_i32, %c0_i32_0 : i32, i32
  }
  func.func @transform_5(%arg0: i32, %arg1: i32) -> (i32, i32) {
    %c0_i32 = arith.constant 0 : i32
    %c0_i32_0 = arith.constant 0 : i32
    %c0_i32_1 = arith.constant 0 : i32
    return %c0_i32, %c0_i32_0 : i32, i32
  }
  func.func @transform_6(%arg0: i32, %arg1: i32) -> (i32, i32) {
    %c0_i32 = arith.constant 0 : i32
    %c0_i32_0 = arith.constant 0 : i32
    %c0_i32_1 = arith.constant 0 : i32
    return %c0_i32, %c0_i32_0 : i32, i32
  }
  func.func @transform_7(%arg0: i32, %arg1: i32) -> (i32, i32, i32) {
    %c0_i32 = arith.constant 0 : i32
    %c0_i32_0 = arith.constant 0 : i32
    %c0_i32_1 = arith.constant 0 : i32
    return %arg0, %c0_i32, %c0_i32_0 : i32, i32, i32
  }
}

module attributes {stable_mosaic.version = 11 : i64} {
  func.func @_fullmodel_kernel(%arg0: i32, %arg1: i32, %arg2: memref<1x16x128xbf16, #tpu.memory_space<vmem>>, %arg3: memref<128x128xbf16, #tpu.memory_space<vmem>>, %arg4: memref<1x128xf32, #tpu.memory_space<vmem>>, %arg5: memref<128x128xbf16, #tpu.memory_space<vmem>>, %arg6: memref<1x128xf32, #tpu.memory_space<vmem>>, %arg7: memref<128x128xbf16, #tpu.memory_space<vmem>>, %arg8: memref<1x128xf32, #tpu.memory_space<vmem>>, %arg9: memref<1x1x128xf32, #tpu.memory_space<vmem>>, %arg10: memref<8x128xf32, #tpu.memory_space<vmem>>) attributes {dimension_semantics = [#tpu.dimension_semantics<parallel>, #tpu.dimension_semantics<arbitrary>], iteration_bounds = array<i64: 2, 1>, scalar_prefetch = 0 : i64, scratch_operands = 1 : i64, tpu.core_type = #tpu.core_type<tc>, window_params = [{transform_indices = @transform_0, window_bounds = array<i64: 1, 16, 128>}, {pipeline_mode = #tpu.pipeline_mode<synchronous>, transform_indices = @transform_1, window_bounds = array<i64: 128, 128>}, {pipeline_mode = #tpu.pipeline_mode<synchronous>, transform_indices = @transform_2, window_bounds = array<i64: 1, 128>}, {pipeline_mode = #tpu.pipeline_mode<synchronous>, transform_indices = @transform_3, window_bounds = array<i64: 128, 128>}, {pipeline_mode = #tpu.pipeline_mode<synchronous>, transform_indices = @transform_4, window_bounds = array<i64: 1, 128>}, {pipeline_mode = #tpu.pipeline_mode<synchronous>, transform_indices = @transform_5, window_bounds = array<i64: 128, 128>}, {pipeline_mode = #tpu.pipeline_mode<synchronous>, transform_indices = @transform_6, window_bounds = array<i64: 1, 128>}, {transform_indices = @transform_7, window_bounds = array<i64: 1, 1, 128>}]} {
    %c0_i32 = arith.constant 0 : i32
    %0 = arith.cmpi eq, %arg1, %c0_i32 : i32
    %1 = arith.extui %0 : i1 to i32
    %c0_i32_0 = arith.constant 0 : i32
    %2 = arith.cmpi ne, %1, %c0_i32_0 : i32
    scf.if %2 {
      %cst_23 = arith.constant 0.000000e+00 : f32
      %37 = vector.broadcast %cst_23 : f32 to vector<8x128xf32>
      %c0_24 = arith.constant 0 : index
      %c0_25 = arith.constant 0 : index
      %38 = vector.load %arg10[%c0_24, %c0_25] : memref<8x128xf32, #tpu.memory_space<vmem>>, vector<8x128xf32>
      tpu.vector_store %arg10[%c0_24, %c0_25], %37 {strides = array<i32>} : memref<8x128xf32, #tpu.memory_space<vmem>>, vector<8x128xf32>,
    } else {
    }
    %c0 = arith.constant 0 : index
    %c0_1 = arith.constant 0 : index
    %c0_2 = arith.constant 0 : index
    %3 = vector.load %arg2[%c0, %c0_1, %c0_2] : memref<1x16x128xbf16, #tpu.memory_space<vmem>>, vector<1x16x128xbf16>
    %4 = vector.shape_cast %3 : vector<1x16x128xbf16> to vector<16x128xbf16>
    %c0_3 = arith.constant 0 : index
    %c0_4 = arith.constant 0 : index
    %5 = vector.load %arg3[%c0_3, %c0_4] : memref<128x128xbf16, #tpu.memory_space<vmem>>, vector<128x128xbf16>
    %cst = arith.constant dense<0.000000e+00> : vector<16x128xf32>
    %6 = tpu.matmul %4, %5, %cst {dimension_numbers = #tpu.dot_dimension_numbers<[1], [0], [0], [1], [0, 0, 1, 1], [], []>} : vector<16x128xbf16>, vector<128x128xbf16>, vector<16x128xf32> -> vector<16x128xf32>
    %c0_5 = arith.constant 0 : index
    %c0_6 = arith.constant 0 : index
    %7 = vector.load %arg4[%c0_5, %c0_6] : memref<1x128xf32, #tpu.memory_space<vmem>>, vector<1x128xf32>
    %8 = vector.broadcast %7 : vector<1x128xf32> to vector<16x128xf32>
    %9 = arith.addf %6, %8 : vector<16x128xf32>
    %10 = arith.truncf %9 : vector<16x128xf32> to vector<16x128xbf16>
    %c0_7 = arith.constant 0 : index
    %c0_8 = arith.constant 0 : index
    %11 = vector.load %arg5[%c0_7, %c0_8] : memref<128x128xbf16, #tpu.memory_space<vmem>>, vector<128x128xbf16>
    %cst_9 = arith.constant dense<0.000000e+00> : vector<16x128xf32>
    %12 = tpu.matmul %10, %11, %cst_9 {dimension_numbers = #tpu.dot_dimension_numbers<[1], [0], [0], [1], [0, 0, 1, 1], [], []>} : vector<16x128xbf16>, vector<128x128xbf16>, vector<16x128xf32> -> vector<16x128xf32>
    %c0_10 = arith.constant 0 : index
    %c0_11 = arith.constant 0 : index
    %13 = vector.load %arg6[%c0_10, %c0_11] : memref<1x128xf32, #tpu.memory_space<vmem>>, vector<1x128xf32>
    %14 = vector.broadcast %13 : vector<1x128xf32> to vector<16x128xf32>
    %15 = arith.addf %12, %14 : vector<16x128xf32>
    %16 = arith.mulf %15, %15 : vector<16x128xf32>
    %17 = arith.mulf %15, %16 : vector<16x128xf32>
    %cst_12 = arith.constant 4.471500e-02 : f32
    %18 = vector.broadcast %cst_12 : f32 to vector<16x128xf32>
    %19 = arith.mulf %18, %17 : vector<16x128xf32>
    %20 = arith.addf %15, %19 : vector<16x128xf32>
    %cst_13 = arith.constant 0.797884583 : f32
    %21 = vector.broadcast %cst_13 : f32 to vector<16x128xf32>
    %22 = arith.mulf %21, %20 : vector<16x128xf32>
    %23 = math.tanh %22 : vector<16x128xf32>
    %cst_14 = arith.constant 1.000000e+00 : f32
    %24 = vector.broadcast %cst_14 : f32 to vector<16x128xf32>
    %25 = arith.addf %24, %23 : vector<16x128xf32>
    %cst_15 = arith.constant 5.000000e-01 : f32
    %26 = vector.broadcast %cst_15 : f32 to vector<16x128xf32>
    %27 = arith.mulf %26, %25 : vector<16x128xf32>
    %28 = arith.mulf %15, %27 : vector<16x128xf32>
    %c0_16 = arith.constant 0 : index
    %c0_17 = arith.constant 0 : index
    %29 = vector.load %arg10[%c0_16, %c0_17] : memref<8x128xf32, #tpu.memory_space<vmem>>, vector<8x128xf32>
    %30 = vector.shape_cast %28 : vector<16x128xf32> to vector<2x8x128xf32>
    %cst_18 = arith.constant dense<0.000000e+00> : vector<8x128xf32>
    %31 = vector.multi_reduction <add>, %30, %cst_18 [0] : vector<2x8x128xf32> to vector<8x128xf32>
    %32 = arith.addf %29, %31 : vector<8x128xf32>
    %c0_19 = arith.constant 0 : index
    %c0_20 = arith.constant 0 : index
    %33 = vector.load %arg10[%c0_19, %c0_20] : memref<8x128xf32, #tpu.memory_space<vmem>>, vector<8x128xf32>
    tpu.vector_store %arg10[%c0_19, %c0_20], %32 {strides = array<i32>} : memref<8x128xf32, #tpu.memory_space<vmem>>, vector<8x128xf32>,
    %c0_i32_21 = arith.constant 0 : i32
    %34 = arith.cmpi eq, %arg1, %c0_i32_21 : i32
    %35 = arith.extui %34 : i1 to i32
    %c0_i32_22 = arith.constant 0 : i32
    %36 = arith.cmpi ne, %35, %c0_i32_22 : i32
    scf.if %36 {
      %c0_23 = arith.constant 0 : index
      %c0_24 = arith.constant 0 : index
      %37 = vector.load %arg10[%c0_23, %c0_24] : memref<8x128xf32, #tpu.memory_space<vmem>>, vector<8x128xf32>
      %cst_25 = arith.constant dense<0.000000e+00> : vector<128xf32>
      %38 = vector.multi_reduction <add>, %37, %cst_25 [0] : vector<8x128xf32> to vector<128xf32>
      %39 = vector.shape_cast %38 : vector<128xf32> to vector<1x128xf32>
      %cst_26 = arith.constant 6.250000e-02 : f32
      %40 = vector.broadcast %cst_26 : f32 to vector<1x128xf32>
      %41 = arith.mulf %39, %40 : vector<1x128xf32>
      %42 = arith.truncf %41 : vector<1x128xf32> to vector<1x128xbf16>
      %c0_27 = arith.constant 0 : index
      %c0_28 = arith.constant 0 : index
      %43 = vector.load %arg7[%c0_27, %c0_28] : memref<128x128xbf16, #tpu.memory_space<vmem>>, vector<128x128xbf16>
      %cst_29 = arith.constant dense<0.000000e+00> : vector<1x128xf32>
      %44 = tpu.matmul %42, %43, %cst_29 {dimension_numbers = #tpu.dot_dimension_numbers<[1], [0], [0], [1], [0, 0, 1, 1], [], []>} : vector<1x128xbf16>, vector<128x128xbf16>, vector<1x128xf32> -> vector<1x128xf32>
      %c0_30 = arith.constant 0 : index
      %c0_31 = arith.constant 0 : index
      %45 = vector.load %arg8[%c0_30, %c0_31] : memref<1x128xf32, #tpu.memory_space<vmem>>, vector<1x128xf32>
      %46 = arith.addf %44, %45 : vector<1x128xf32>
      %c0_32 = arith.constant 0 : index
      %c0_33 = arith.constant 0 : index
      %c0_34 = arith.constant 0 : index
      %47 = vector.load %arg9[%c0_32, %c0_33, %c0_34] : memref<1x1x128xf32, #tpu.memory_space<vmem>>, vector<1x1x128xf32>
      %48 = vector.shape_cast %47 : vector<1x1x128xf32> to vector<1x128xf32>
      %49 = vector.shape_cast %46 : vector<1x128xf32> to vector<1x1x128xf32>
      tpu.vector_store %arg9[%c0_32, %c0_33, %c0_34], %49 {strides = array<i32>} : memref<1x1x128xf32, #tpu.memory_space<vmem>>, vector<1x1x128xf32>,
    } else {
    }
    return
  }
  func.func @transform_0(%arg0: i32, %arg1: i32) -> (i32, i32, i32) {
    %c0_i32 = arith.constant 0 : i32
    %c0_i32_0 = arith.constant 0 : i32
    return %arg0, %arg1, %c0_i32 : i32, i32, i32
  }
  func.func @transform_1(%arg0: i32, %arg1: i32) -> (i32, i32) {
    %c0_i32 = arith.constant 0 : i32
    %c0_i32_0 = arith.constant 0 : i32
    %c0_i32_1 = arith.constant 0 : i32
    return %c0_i32, %c0_i32_0 : i32, i32
  }
  func.func @transform_2(%arg0: i32, %arg1: i32) -> (i32, i32) {
    %c0_i32 = arith.constant 0 : i32
    %c0_i32_0 = arith.constant 0 : i32
    %c0_i32_1 = arith.constant 0 : i32
    return %c0_i32, %c0_i32_0 : i32, i32
  }
  func.func @transform_3(%arg0: i32, %arg1: i32) -> (i32, i32) {
    %c0_i32 = arith.constant 0 : i32
    %c0_i32_0 = arith.constant 0 : i32
    %c0_i32_1 = arith.constant 0 : i32
    return %c0_i32, %c0_i32_0 : i32, i32
  }
  func.func @transform_4(%arg0: i32, %arg1: i32) -> (i32, i32) {
    %c0_i32 = arith.constant 0 : i32
    %c0_i32_0 = arith.constant 0 : i32
    %c0_i32_1 = arith.constant 0 : i32
    return %c0_i32, %c0_i32_0 : i32, i32
  }
  func.func @transform_5(%arg0: i32, %arg1: i32) -> (i32, i32) {
    %c0_i32 = arith.constant 0 : i32
    %c0_i32_0 = arith.constant 0 : i32
    %c0_i32_1 = arith.constant 0 : i32
    return %c0_i32, %c0_i32_0 : i32, i32
  }
  func.func @transform_6(%arg0: i32, %arg1: i32) -> (i32, i32) {
    %c0_i32 = arith.constant 0 : i32
    %c0_i32_0 = arith.constant 0 : i32
    %c0_i32_1 = arith.constant 0 : i32
    return %c0_i32, %c0_i32_0 : i32, i32
  }
  func.func @transform_7(%arg0: i32, %arg1: i32) -> (i32, i32, i32) {
    %c0_i32 = arith.constant 0 : i32
    %c0_i32_0 = arith.constant 0 : i32
    %c0_i32_1 = arith.constant 0 : i32
    return %arg0, %c0_i32, %c0_i32_0 : i32, i32, i32
  }
}

</mosaic_0001>

<llo_original>
// kernel: tpu_custom_call.1
$region0: #{tpu_custom_call.1}
  #allocation0 [shape = 'u32[]', space=smem, size = 0x4, offset = 0x4, fixed_abs, tag = 'smem constant byte address 0x4 - core index']
  #allocation1 [shape = 'u32[144,128]{1,0:T(1,128)}', space=vmem, size = 0x12000, scoped, tag = 'internal scratch']
  #allocation2 [shape = 'f32[8,128]{1,0:T(8,128)}', space=vmem, size = 0x1000, scoped, tag = 'scratch operand']
  %s0 = inlined_call_operand.hbm [shape: bf16[2,16,128], index: 0, kind: input, shape index: {}]
  %s1 = inlined_call_operand.hbm [shape: bf16[128,128], index: 1, kind: input, shape index: {}]
  %s2 = inlined_call_operand.vmem [shape: f32[1,128], index: 2, kind: input, shape index: {}]
  %s3 = inlined_call_operand.hbm [shape: bf16[128,128], index: 3, kind: input, shape index: {}]
  %s4 = inlined_call_operand.vmem [shape: f32[1,128], index: 4, kind: input, shape index: {}]
  %s5 = inlined_call_operand.hbm [shape: bf16[128,128], index: 5, kind: input, shape index: {}]
  %s6 = inlined_call_operand.vmem [shape: f32[1,128], index: 6, kind: input, shape index: {}]
  %s7 = inlined_call_operand.hbm [shape: f32[2,1,128], index: 7, kind: output, shape index: {}]
  %s8 = sld [smem:[#allocation0]]
  $region85: #{tpu_custom_call.1} parent=0
    _
  %s10 = ssub.s32 1, %s8
  %s11 = scalar_select 0, %s10, %s8
  $region1: #{tpu_custom_call.1} parent=0
    #allocation3 [shape = 'u8[8192]{0}', space=vmem, size = 0x2000, scoped, tag = 'input window, operand 0']
    #allocation4 [shape = 's32[2]{0}', space=sflag, size = 0x8, scoped, tag = 'scoped memory for tpu_custom_call.1']
    #allocation5 [shape = 's32[2]{0}', space=sflag, size = 0x8, scoped, tag = 'scoped memory for tpu_custom_call.1']
    #allocation6 [shape = 'u8[32768]{0}', space=vmem, size = 0x8000, scoped, tag = 'input window, operand 1, single buffered']
    #allocation7 [shape = 's32[1]{0}', space=sflag, size = 0x4, scoped, tag = 'scoped memory for tpu_custom_call.1']
    #allocation8 [shape = 'u8[32768]{0}', space=vmem, size = 0x8000, scoped, tag = 'input window, operand 3, single buffered']
    #allocation9 [shape = 'u8[32768]{0}', space=vmem, size = 0x8000, scoped, tag = 'input window, operand 5, single buffered']
    #allocation10 [shape = 's32[1]{0}', space=sflag, size = 0x4, scoped, tag = 'scoped memory for tpu_custom_call.1']
    #allocation11 [shape = 'u8[1024]{0}', space=vmem, size = 0x400, scoped, tag = 'output window, operand 0']
    %12 = vsyncpa [#allocation4], 0
    %s13 = scalar_lea.sflag [#allocation4], 1
    %14 = vsyncpa %s13, 0
    %15 = vsyncpa [#allocation7], 0
    %16 = vsyncpa [#allocation10], 0
    %17 = vsyncpa [#allocation5], 0
    %s18 = scalar_lea.sflag [#allocation5], 1
    %19 = vsyncpa %s18, 0
    loop: start=0, step=1, limit=4
    $region2: #{tpu_custom_call.1} parent=1 // loop_pre_header
      _
    $region3: #{tpu_custom_call.1} parent=1 // loop_header
      %s21 = sphi 0, %s25
      %p22 = scmp.ge.s32.totalorder %s21, 4
      %s28 = sphi 0, %s40
      %s29 = sphi 0, %s36
      %s30 = sphi 0, %s28
      %s31 = sphi 0, %s29
      %s32 = sphi 0, %s30
      %s33 = sphi 0, %s31
      %s45 = sphi 0, %s47
      %s48 = sphi 0, %s45
      %s49 = sphi 0, %s48
      %s65 = sphi 0, %s49
      %s69 = sphi 0, %s69
      %s71 = sphi 0, %s69
      %s72 = sphi 0, %s71
      %s86 = sphi 0, %s72
      %s90 = sphi 0, %s90
      %s92 = sphi 0, %s90
      %s93 = sphi 0, %s92
      %s107 = sphi 0, %s93
      %s111 = sphi 0, %s111
      %s113 = sphi 0, %s111
      %s114 = sphi 0, %s113
      %s128 = sphi 0, %s114
      %s132 = sphi 0, %s132
      %s134 = sphi 0, %s132
      %s135 = sphi 0, %s134
      %s149 = sphi 0, %s135
      %s153 = sphi 0, %s153
      %s155 = sphi 0, %s153
      %s156 = sphi 0, %s155
      %s170 = sphi 0, %s156
      %s174 = sphi 0, %s174
      %s176 = sphi 0, %s174
      %s177 = sphi 0, %s176
      %s191 = sphi 0, %s177
      %s197 = sphi 0, %s199
      %s200 = sphi 0, %s197
      %s201 = sphi 0, %s200
      %s217 = sphi 0, %s201
    $region4: #{tpu_custom_call.1} parent=1 // loop_header_branch
      %24 = sbr.rel (%p22) target = $region8
    $region5: #{tpu_custom_call.1} parent=1 // loop_body
      %s26 = ssub.s32 %s21, 1
      %s27 = ssub.s32 %s21, 2
      %s34 = sadd.s32 1, %s29
      %p35 = scmp.ge.s32.totalorder %s34, 1
      %s36 = scalar_select %p35, 0, %s34
      %s37 = sadd.s32 1, %s28
      %s38 = scalar_select %p35, %s37, %s28
      %p39 = scmp.ge.s32.totalorder %s38, 2
      %s40 = scalar_select %p39, 0, %s38
      %s41 = ssub.s32 %s28, %s40
      %s42 = ssub.s32 %s29, %s36
      %s43 = sor.u32 %s41, %s42
      %p44 = scmp.eq.s32.totalorder %s43, 0
      %s46 = sadd.s32 %s45, 1
      %s47 = scalar_select %p44, %s45, %s46
      %p50 = pneg %p44
      %p51 = scmp.eq.s32.totalorder %s21, 1
      %p52 = por %p50, %p51
      %p53 = scmp.ne.s32.totalorder %s45, %s48
      %p54 = scmp.eq.s32.totalorder %s21, 0
      %p55 = por %p53, %p54
      %p56 = scmp.ne.s32.totalorder %s45, %s48
      %p57 = scmp.eq.s32.totalorder %s26, 1
      %p58 = por %p56, %p57
      %p59 = scmp.ne.s32.totalorder %s48, %s49
      %p60 = scmp.eq.s32.totalorder %s26, 0
      %p61 = por %p59, %p60
      %p62 = scmp.ne.s32.totalorder %s48, %s49
      %p63 = scmp.eq.s32.totalorder %s27, 1
      %p64 = por %p62, %p63
      %p66 = scmp.ne.s32.totalorder %s49, %s65
      %p67 = scmp.eq.s32.totalorder %s27, 0
      %p68 = por %p66, %p67
      %s70 = sadd.s32 %s69, 1
      %p73 = scmp.eq.s32.totalorder %s21, 1
      %p74 = scmp.ne.s32.totalorder %s69, %s71
      %p75 = scmp.eq.s32.totalorder %s21, 0
      %p76 = por %p74, %p75
      %p77 = scmp.ne.s32.totalorder %s69, %s71
      %p78 = scmp.eq.s32.totalorder %s26, 1
      %p79 = por %p77, %p78
      %p80 = scmp.ne.s32.totalorder %s71, %s72
      %p81 = scmp.eq.s32.totalorder %s26, 0
      %p82 = por %p80, %p81
      %p83 = scmp.ne.s32.totalorder %s71, %s72
      %p84 = scmp.eq.s32.totalorder %s27, 1
      %p85 = por %p83, %p84
      %p87 = scmp.ne.s32.totalorder %s72, %s86
      %p88 = scmp.eq.s32.totalorder %s27, 0
      %p89 = por %p87, %p88
      %s91 = sadd.s32 %s90, 1
      %p94 = scmp.eq.s32.totalorder %s21, 1
      %p95 = scmp.ne.s32.totalorder %s90, %s92
      %p96 = scmp.eq.s32.totalorder %s21, 0
      %p97 = por %p95, %p96
      %p98 = scmp.ne.s32.totalorder %s90, %s92
      %p99 = scmp.eq.s32.totalorder %s26, 1
      %p100 = por %p98, %p99
      %p101 = scmp.ne.s32.totalorder %s92, %s93
      %p102 = scmp.eq.s32.totalorder %s26, 0
      %p103 = por %p101, %p102
      %p104 = scmp.ne.s32.totalorder %s92, %s93
      %p105 = scmp.eq.s32.totalorder %s27, 1
      %p106 = por %p104, %p105
      %p108 = scmp.ne.s32.totalorder %s93, %s107
      %p109 = scmp.eq.s32.totalorder %s27, 0
      %p110 = por %p108, %p109
      %s112 = sadd.s32 %s111, 1
      %p115 = scmp.eq.s32.totalorder %s21, 1
      %p116 = scmp.ne.s32.totalorder %s111, %s113
      %p117 = scmp.eq.s32.totalorder %s21, 0
      %p118 = por %p116, %p117
      %p119 = scmp.ne.s32.totalorder %s111, %s113
      %p120 = scmp.eq.s32.totalorder %s26, 1
      %p121 = por %p119, %p120
      %p122 = scmp.ne.s32.totalorder %s113, %s114
      %p123 = scmp.eq.s32.totalorder %s26, 0
      %p124 = por %p122, %p123
      %p125 = scmp.ne.s32.totalorder %s113, %s114
      %p126 = scmp.eq.s32.totalorder %s27, 1
      %p127 = por %p125, %p126
      %p129 = scmp.ne.s32.totalorder %s114, %s128
      %p130 = scmp.eq.s32.totalorder %s27, 0
      %p131 = por %p129, %p130
      %s133 = sadd.s32 %s132, 1
      %p136 = scmp.eq.s32.totalorder %s21, 1
      %p137 = scmp.ne.s32.totalorder %s132, %s134
      %p138 = scmp.eq.s32.totalorder %s21, 0
      %p139 = por %p137, %p138
      %p140 = scmp.ne.s32.totalorder %s132, %s134
      %p141 = scmp.eq.s32.totalorder %s26, 1
      %p142 = por %p140, %p141
      %p143 = scmp.ne.s32.totalorder %s134, %s135
      %p144 = scmp.eq.s32.totalorder %s26, 0
      %p145 = por %p143, %p144
      %p146 = scmp.ne.s32.totalorder %s134, %s135
      %p147 = scmp.eq.s32.totalorder %s27, 1
      %p148 = por %p146, %p147
      %p150 = scmp.ne.s32.totalorder %s135, %s149
      %p151 = scmp.eq.s32.totalorder %s27, 0
      %p152 = por %p150, %p151
      %s154 = sadd.s32 %s153, 1
      %p157 = scmp.eq.s32.totalorder %s21, 1
      %p158 = scmp.ne.s32.totalorder %s153, %s155
      %p159 = scmp.eq.s32.totalorder %s21, 0
      %p160 = por %p158, %p159
      %p161 = scmp.ne.s32.totalorder %s153, %s155
      %p162 = scmp.eq.s32.totalorder %s26, 1
      %p163 = por %p161, %p162
      %p164 = scmp.ne.s32.totalorder %s155, %s156
      %p165 = scmp.eq.s32.totalorder %s26, 0
      %p166 = por %p164, %p165
      %p167 = scmp.ne.s32.totalorder %s155, %s156
      %p168 = scmp.eq.s32.totalorder %s27, 1
      %p169 = por %p167, %p168
      %p171 = scmp.ne.s32.totalorder %s156, %s170
      %p172 = scmp.eq.s32.totalorder %s27, 0
      %p173 = por %p171, %p172
      %s175 = sadd.s32 %s174, 1
      %p178 = scmp.eq.s32.totalorder %s21, 1
      %p179 = scmp.ne.s32.totalorder %s174, %s176
      %p180 = scmp.eq.s32.totalorder %s21, 0
      %p181 = por %p179, %p180
      %p182 = scmp.ne.s32.totalorder %s174, %s176
      %p183 = scmp.eq.s32.totalorder %s26, 1
      %p184 = por %p182, %p183
      %p185 = scmp.ne.s32.totalorder %s176, %s177
      %p186 = scmp.eq.s32.totalorder %s26, 0
      %p187 = por %p185, %p186
      %p188 = scmp.ne.s32.totalorder %s176, %s177
      %p189 = scmp.eq.s32.totalorder %s27, 1
      %p190 = por %p188, %p189
      %p192 = scmp.ne.s32.totalorder %s177, %s191
      %p193 = scmp.eq.s32.totalorder %s27, 0
      %p194 = por %p192, %p193
      %s195 = ssub.s32 %s28, %s40
      %p196 = scmp.eq.s32.totalorder %s195, 0
      %s198 = sadd.s32 %s197, 1
      %s199 = scalar_select %p196, %s197, %s198
      %p202 = pneg %p196
      %p203 = scmp.eq.s32.totalorder %s21, 1
      %p204 = por %p202, %p203
      %p205 = scmp.ne.s32.totalorder %s197, %s200
      %p206 = scmp.eq.s32.totalorder %s21, 0
      %p207 = por %p205, %p206
      %p208 = scmp.ne.s32.totalorder %s197, %s200
      %p209 = scmp.eq.s32.totalorder %s26, 1
      %p210 = por %p208, %p209
      %p211 = scmp.ne.s32.totalorder %s200, %s201
      %p212 = scmp.eq.s32.totalorder %s26, 0
      %p213 = por %p211, %p212
      %p214 = scmp.ne.s32.totalorder %s200, %s201
      %p215 = scmp.eq.s32.totalorder %s27, 1
      %p216 = por %p214, %p215
      %p218 = scmp.ne.s32.totalorder %s201, %s217
      %p219 = scmp.eq.s32.totalorder %s27, 0
      %p220 = por %p218, %p219
      %p221 = scmp.le.s32.totalorder 1, %s21
      %p222 = scmp.lt.s32.totalorder %s21, 3
      %p223 = pnand %p221, %p222
      %p224 = pneg %p223
      // Predicated region
      $region9: #{tpu_custom_call.1} parent=5 // pred_check
        _
      $region10: #{tpu_custom_call.1} parent=5 // pred_check_branch
        %226 = sbr.rel (%p223) target = $region12
      $region11: #{tpu_custom_call.1} parent=5 // pred_region
        %s227 = ssub.s32 %s21, 1
        // Predicated region
        $region13: #{tpu_custom_call.1} parent=11 // pred_check
          %p228 = pneg %p82
        $region14: #{tpu_custom_call.1} parent=11 // pred_check_branch
          %230 = sbr.rel (%p228) target = $region16
        $region15: #{tpu_custom_call.1} parent=11 // pred_region
          %s232 = ssub.s32 1024, 1024
          %233 = vsyncadd [#allocation7], %s232
          %s234 = sshll.u32 [#allocation6], 4
          %s235 = int_to_ptr.vmem [resolvable:$true] %s234
          %240 = dma.hbm_to_vmem [thread:$0]  %s1, 1024, %s235, [#allocation7], 64, 64, 4
        $region16: #{tpu_custom_call.1} parent=11 // pred_fallthru
          _
        // Predicated region
        $region17: #{tpu_custom_call.1} parent=11 // pred_check
          %p241 = pneg %p103
        $region18: #{tpu_custom_call.1} parent=11 // pred_check_branch
          %243 = sbr.rel (%p241) target = $region20
        $region19: #{tpu_custom_call.1} parent=11 // pred_region
          _
        $region20: #{tpu_custom_call.1} parent=11 // pred_fallthru
          _
        // Predicated region
        $region21: #{tpu_custom_call.1} parent=11 // pred_check
          %p244 = pneg %p124
        $region22: #{tpu_custom_call.1} parent=11 // pred_check_branch
          %246 = sbr.rel (%p244) target = $region24
        $region23: #{tpu_custom_call.1} parent=11 // pred_region
          %s248 = ssub.s32 1024, 1024
          %249 = vsyncadd [#allocation7], %s248
          %s250 = sshll.u32 [#allocation8], 4
          %s251 = int_to_ptr.vmem [resolvable:$true] %s250
          %256 = dma.hbm_to_vmem [thread:$0]  %s3, 1024, %s251, [#allocation7], 64, 64, 4
        $region24: #{tpu_custom_call.1} parent=11 // pred_fallthru
          _
        // Predicated region
        $region25: #{tpu_custom_call.1} parent=11 // pred_check
          %p257 = pneg %p145
        $region26: #{tpu_custom_call.1} parent=11 // pred_check_branch
          %259 = sbr.rel (%p257) target = $region28
        $region27: #{tpu_custom_call.1} parent=11 // pred_region
          _
        $region28: #{tpu_custom_call.1} parent=11 // pred_fallthru
          _
        // Predicated region
        $region29: #{tpu_custom_call.1} parent=11 // pred_check
          %p260 = pneg %p166
        $region30: #{tpu_custom_call.1} parent=11 // pred_check_branch
          %262 = sbr.rel (%p260) target = $region32
        $region31: #{tpu_custom_call.1} parent=11 // pred_region
          %s264 = ssub.s32 1024, 1024
          %265 = vsyncadd [#allocation10], %s264
          %s266 = sshll.u32 [#allocation9], 4
          %s267 = int_to_ptr.vmem [resolvable:$true] %s266
          %272 = dma.hbm_to_vmem [thread:$0]  %s5, 1024, %s267, [#allocation10], 64, 64, 4
        $region32: #{tpu_custom_call.1} parent=11 // pred_fallthru
          _
        // Predicated region
        $region33: #{tpu_custom_call.1} parent=11 // pred_check
          %p273 = pneg %p187
        $region34: #{tpu_custom_call.1} parent=11 // pred_check_branch
          %275 = sbr.rel (%p273) target = $region36
        $region35: #{tpu_custom_call.1} parent=11 // pred_region
          _
        $region36: #{tpu_custom_call.1} parent=11 // pred_fallthru
          _
      $region12: #{tpu_custom_call.1} parent=5 // pred_fallthru
        _
      %p276 = scmp.lt.s32.totalorder %s21, 2
      // Predicated region
      $region37: #{tpu_custom_call.1} parent=5 // pred_check
        %p277 = pneg %p276
      $region38: #{tpu_custom_call.1} parent=5 // pred_check_branch
        %279 = sbr.rel (%p277) target = $region40
      $region39: #{tpu_custom_call.1} parent=5 // pred_region
        // Predicated region
        $region41: #{tpu_custom_call.1} parent=39 // pred_check
          %p280 = pneg %p55
        $region42: #{tpu_custom_call.1} parent=39 // pred_check_branch
          %282 = sbr.rel (%p280) target = $region44
        $region43: #{tpu_custom_call.1} parent=39 // pred_region
          %s283 = sand.u32 %s45, 1
          %s284 = scalar_lea.sflag [#allocation4], %s283
          %s285 = sand.u32 %s45, 1
          %s286 = smul.addr %s285, 8
          %s287 = scalar_lea.vmem [#allocation3], %s286
          %s288 = smul.u32 2, %s29
          %s290 = ssub.s32 128, 128
          %291 = vsyncadd %s284, %s290
          %s292 = smul.addr %s28, 2
          %s293 = sadd.s32 %s288, %s292
          %s294 = smul.addr %s293, 64
          %s295 = scalar_lea.hbm %s0, %s294
          %s296 = sshll.u32 %s287, 4
          %s297 = int_to_ptr.vmem [resolvable:$true] %s296
          %302 = dma.hbm_to_vmem [thread:$0]  %s295, 128, %s297, %s284, 64, 64, 4
        $region44: #{tpu_custom_call.1} parent=39 // pred_fallthru
          _
      $region40: #{tpu_custom_call.1} parent=5 // pred_fallthru
        _
      %p303 = scmp.le.s32.totalorder 1, %s21
      %p304 = scmp.lt.s32.totalorder %s21, 3
      %p305 = pnand %p303, %p304
      %p306 = pneg %p305
      // Predicated region
      $region45: #{tpu_custom_call.1} parent=5 // pred_check
        _
      $region46: #{tpu_custom_call.1} parent=5 // pred_check_branch
        %308 = sbr.rel (%p305) target = $region48
      $region47: #{tpu_custom_call.1} parent=5 // pred_region
        %s309 = ssub.s32 %s21, 1
        %s310 = sand.u32 %s48, 1
        %s311 = scalar_lea.sflag [#allocation4], %s310
        %s312 = sand.u32 %s48, 1
        %s313 = smul.addr %s312, 8
        %s314 = scalar_lea.vmem [#allocation3], %s313
        // Predicated region
        $region49: #{tpu_custom_call.1} parent=47 // pred_check
          %p315 = pneg %p61
        $region50: #{tpu_custom_call.1} parent=47 // pred_check_branch
          %317 = sbr.rel (%p315) target = $region52
        $region51: #{tpu_custom_call.1} parent=47 // pred_region
          %318 = dma.done %s311, 128
        $region52: #{tpu_custom_call.1} parent=47 // pred_fallthru
          _
        // Predicated region
        $region53: #{tpu_custom_call.1} parent=47 // pred_check
          %p319 = pneg %p82
        $region54: #{tpu_custom_call.1} parent=47 // pred_check_branch
          %321 = sbr.rel (%p319) target = $region56
        $region55: #{tpu_custom_call.1} parent=47 // pred_region
          %322 = dma.done [#allocation7], 1024
        $region56: #{tpu_custom_call.1} parent=47 // pred_fallthru
          _
        // Predicated region
        $region57: #{tpu_custom_call.1} parent=47 // pred_check
          %p323 = pneg %p124
        $region58: #{tpu_custom_call.1} parent=47 // pred_check_branch
          %325 = sbr.rel (%p323) target = $region60
        $region59: #{tpu_custom_call.1} parent=47 // pred_region
          %326 = dma.done [#allocation7], 1024
        $region60: #{tpu_custom_call.1} parent=47 // pred_fallthru
          _
        // Predicated region
        $region61: #{tpu_custom_call.1} parent=47 // pred_check
          %p327 = pneg %p166
        $region62: #{tpu_custom_call.1} parent=47 // pred_check_branch
          %329 = sbr.rel (%p327) target = $region64
        $region63: #{tpu_custom_call.1} parent=47 // pred_region
          %330 = dma.done [#allocation10], 1024
        $region64: #{tpu_custom_call.1} parent=47 // pred_fallthru
          _
        %s331 = sand.u32 %s48, 1
        %s332 = scalar_lea.sflag [#allocation4], %s331
        %s333 = sand.u32 %s48, 1
        %s334 = smul.addr %s333, 8
        %s335 = scalar_lea.vmem [#allocation3], %s334
        %p336 = pneg %p61
        %p337 = pneg %p58
        %p338 = pneg %p82
        %p339 = pneg %p79
        %p340 = pneg %p103
        %p341 = pneg %p100
        %p342 = pneg %p124
        %p343 = pneg %p121
        %p344 = pneg %p145
        %p345 = pneg %p142
        %p346 = pneg %p166
        %p347 = pneg %p163
        %p348 = pneg %p187
        %p349 = pneg %p184
        %p350 = pneg %p213
        %p351 = pneg %p210
        %s352 = sand.u32 %s200, 1
        %s353 = scalar_lea.sflag [#allocation5], %s352
        %s354 = sand.u32 %s200, 1
        %s355 = scalar_lea.vmem [#allocation11], %s354
        %s356 = smul.u32 2, %s31
        %p358 = scmp.eq.s32.totalorder %s31, 0
        // Predicated region
        $region65: #{tpu_custom_call.1} parent=47 // pred_check
          %p359 = pneg %p358
        $region66: #{tpu_custom_call.1} parent=47 // pred_check_branch
          %361 = sbr.rel (%p359) target = $region68
        $region67: #{tpu_custom_call.1} parent=47 // pred_region
          %362 = vst [vmem:[#allocation2] sm:$0xff] 0.0
        $region68: #{tpu_custom_call.1} parent=47 // pred_fallthru
          _
        %v363 = vld [vmem:[%s314] sm:$0xf]
        %v364 = vld [vmem:[%s314 + $0x4] sm:$0xf]
        %v365 = vld [vmem:[#allocation6] sm:$0xf]
        %v366 = vld [vmem:[#allocation6 + $0x4] sm:$0xf]
        %v367 = vld [vmem:[#allocation6 + $0x8] sm:$0xf]
        %v368 = vld [vmem:[#allocation6 + $0xc] sm:$0xf]
        %v369 = vld [vmem:[#allocation6 + $0x10] sm:$0xf]
        %v370 = vld [vmem:[#allocation6 + $0x14] sm:$0xf]
        %v371 = vld [vmem:[#allocation6 + $0x18] sm:$0xf]
        %v372 = vld [vmem:[#allocation6 + $0x1c] sm:$0xf]
        %v373 = vld [vmem:[#allocation6 + $0x20] sm:$0xf]
        %v374 = vld [vmem:[#allocation6 + $0x24] sm:$0xf]
        %v375 = vld [vmem:[#allocation6 + $0x28] sm:$0xf]
        %v376 = vld [vmem:[#allocation6 + $0x2c] sm:$0xf]
        %v377 = vld [vmem:[#allocation6 + $0x30] sm:$0xf]
        %v378 = vld [vmem:[#allocation6 + $0x34] sm:$0xf]
        %v379 = vld [vmem:[#allocation6 + $0x38] sm:$0xf]
        %v380 = vld [vmem:[#allocation6 + $0x3c] sm:$0xf]
        %v381 = vld [vmem:[%s2] sm:$0x1]
        %v383 = vlaneseq
        %v384 = vshrl.u32 %v383, 7
        %v385 = vsub.s32 0, %v384
        %v386 = vrot.slane %v381, %v385
        %v390 = vunpack.c.l.b16 %v363
        %v391 = vunpack.c.l.b16 %v364
        %v392 = vpack.c.b16 %v391, %v390
        %v410 = vunpack.c.l.b16 %v365
        %v411 = vunpack.c.l.b16 %v366
        %v412 = vunpack.c.l.b16 %v367
        %v413 = vunpack.c.l.b16 %v368
        %v414 = vunpack.c.l.b16 %v369
        %v415 = vunpack.c.l.b16 %v370
        %v416 = vunpack.c.l.b16 %v371
        %v417 = vunpack.c.l.b16 %v372
        %v418 = vunpack.c.l.b16 %v373
        %v419 = vunpack.c.l.b16 %v374
        %v420 = vunpack.c.l.b16 %v375
        %v421 = vunpack.c.l.b16 %v376
        %v422 = vunpack.c.l.b16 %v377
        %v423 = vunpack.c.l.b16 %v378
        %v424 = vunpack.c.l.b16 %v379
        %v425 = vunpack.c.l.b16 %v380
        %v426 = vpack.c.b16 %v411, %v410
        %v427 = vpack.c.b16 %v413, %v412
        %v428 = vpack.c.b16 %v415, %v414
        %v429 = vpack.c.b16 %v417, %v416
        %v430 = vpack.c.b16 %v419, %v418
        %v431 = vpack.c.b16 %v421, %v420
        %v432 = vpack.c.b16 %v423, %v422
        %v433 = vpack.c.b16 %v425, %v424
        %442 = vmatprep.subr.bf16.mxu0 0
        %443 = vmatpush1.bf16.msra.mxu0 %v426
        %444 = vmatprep.subr.bf16.mxu0 0
        %445 = vmatpush1.bf16.msra.mxu0 %v427
        %446 = vmatprep.subr.bf16.mxu0 0
        %447 = vmatpush1.bf16.msra.mxu0 %v428
        %448 = vmatprep.subr.bf16.mxu0 0
        %449 = vmatpush1.bf16.msra.mxu0 %v429
        %450 = vmatprep.subr.bf16.mxu0 0
        %451 = vmatpush1.bf16.msra.mxu0 %v430
        %452 = vmatprep.subr.bf16.mxu0 0
        %453 = vmatpush1.bf16.msra.mxu0 %v431
        %454 = vmatprep.subr.bf16.mxu0 0
        %455 = vmatpush1.bf16.msra.mxu0 %v432
        %456 = vmatprep.subr.bf16.mxu0 0
        %457 = vmatpush1.bf16.msra.mxu0 %v433
        %458 = vmatprep.subr.bf16.mxu0 0
        %459 = vmatpush1.bf16.msra.mxu0 0
        %460 = vmatprep.subr.bf16.mxu0 0
        %461 = vmatpush1.bf16.msra.mxu0 0
        %462 = vmatprep.subr.bf16.mxu0 0
        %463 = vmatpush1.bf16.msra.mxu0 0
        %464 = vmatprep.subr.bf16.mxu0 0
        %465 = vmatpush1.bf16.msra.mxu0 0
        %466 = vmatprep.subr.bf16.mxu0 0
        %467 = vmatpush1.bf16.msra.mxu0 0
        %468 = vmatprep.subr.bf16.mxu0 0
        %469 = vmatpush1.bf16.msra.mxu0 0
        %470 = vmatprep.subr.bf16.mxu0 0
        %471 = vmatpush1.bf16.msra.mxu0 0
        %472 = vmatprep.subr.bf16.mxu0 0
        %473 = vmatpush1.bf16.msra.mxu0 0
        %474 = vmatprep.mubr.bf16.mxu0 0
        %475 = vmatmul.mubr.bf16.gmra.mrb[0].mxu0 %v392
        %v476 = vpop.f32.mrb[0].mxu0
        %v477 = vadd.f32 %v386, %v476
        %v478 = vpop.f32.mrb[0].mxu0
        %v479 = vpop.f32.mrb[0].mxu0
        %v480 = vadd.f32 %v386, %v479
        %v481 = vpop.f32.mrb[0].mxu0
        %482 = vdwg.mxu0
        %v483 = vpack.c.bf16 %v480, %v477
        %v484 = vld [vmem:[#allocation8] sm:$0xf]
        %v485 = vld [vmem:[#allocation8 + $0x4] sm:$0xf]
        %v486 = vld [vmem:[#allocation8 + $0x8] sm:$0xf]
        %v487 = vld [vmem:[#allocation8 + $0xc] sm:$0xf]
        %v488 = vld [vmem:[#allocation8 + $0x10] sm:$0xf]
        %v489 = vld [vmem:[#allocation8 + $0x14] sm:$0xf]
        %v490 = vld [vmem:[#allocation8 + $0x18] sm:$0xf]
        %v491 = vld [vmem:[#allocation8 + $0x1c] sm:$0xf]
        %v492 = vld [vmem:[#allocation8 + $0x20] sm:$0xf]
        %v493 = vld [vmem:[#allocation8 + $0x24] sm:$0xf]
        %v494 = vld [vmem:[#allocation8 + $0x28] sm:$0xf]
        %v495 = vld [vmem:[#allocation8 + $0x2c] sm:$0xf]
        %v496 = vld [vmem:[#allocation8 + $0x30] sm:$0xf]
        %v497 = vld [vmem:[#allocation8 + $0x34] sm:$0xf]
        %v498 = vld [vmem:[#allocation8 + $0x38] sm:$0xf]
        %v499 = vld [vmem:[#allocation8 + $0x3c] sm:$0xf]
        %v500 = vld [vmem:[%s4] sm:$0x1]
        %v502 = vlaneseq
        %v503 = vshrl.u32 %v502, 7
        %v504 = vsub.s32 0, %v503
        %v505 = vrot.slane %v500, %v504
        %v523 = vunpack.c.l.b16 %v484
        %v524 = vunpack.c.l.b16 %v485
        %v525 = vunpack.c.l.b16 %v486
        %v526 = vunpack.c.l.b16 %v487
        %v527 = vunpack.c.l.b16 %v488
        %v528 = vunpack.c.l.b16 %v489
        %v529 = vunpack.c.l.b16 %v490
        %v530 = vunpack.c.l.b16 %v491
        %v531 = vunpack.c.l.b16 %v492
        %v532 = vunpack.c.l.b16 %v493
        %v533 = vunpack.c.l.b16 %v494
        %v534 = vunpack.c.l.b16 %v495
        %v535 = vunpack.c.l.b16 %v496
        %v536 = vunpack.c.l.b16 %v497
        %v537 = vunpack.c.l.b16 %v498
        %v538 = vunpack.c.l.b16 %v499
        %v539 = vpack.c.b16 %v524, %v523
        %v540 = vpack.c.b16 %v526, %v525
        %v541 = vpack.c.b16 %v528, %v527
        %v542 = vpack.c.b16 %v530, %v529
        %v543 = vpack.c.b16 %v532, %v531
        %v544 = vpack.c.b16 %v534, %v533
        %v545 = vpack.c.b16 %v536, %v535
        %v546 = vpack.c.b16 %v538, %v537
        %555 = vmatprep.subr.bf16.mxu0 0
        %556 = vmatpush1.bf16.msra.mxu0 %v539
        %557 = vmatprep.subr.bf16.mxu0 0
        %558 = vmatpush1.bf16.msra.mxu0 %v540
        %559 = vmatprep.subr.bf16.mxu0 0
        %560 = vmatpush1.bf16.msra.mxu0 %v541
        %561 = vmatprep.subr.bf16.mxu0 0
        %562 = vmatpush1.bf16.msra.mxu0 %v542
        %563 = vmatprep.subr.bf16.mxu0 0
        %564 = vmatpush1.bf16.msra.mxu0 %v543
        %565 = vmatprep.subr.bf16.mxu0 0
        %566 = vmatpush1.bf16.msra.mxu0 %v544
        %567 = vmatprep.subr.bf16.mxu0 0
        %568 = vmatpush1.bf16.msra.mxu0 %v545
        %569 = vmatprep.subr.bf16.mxu0 0
        %570 = vmatpush1.bf16.msra.mxu0 %v546
        %571 = vmatprep.subr.bf16.mxu0 0
        %572 = vmatpush1.bf16.msra.mxu0 0
        %573 = vmatprep.subr.bf16.mxu0 0
        %574 = vmatpush1.bf16.msra.mxu0 0
        %575 = vmatprep.subr.bf16.mxu0 0
        %576 = vmatpush1.bf16.msra.mxu0 0
        %577 = vmatprep.subr.bf16.mxu0 0
        %578 = vmatpush1.bf16.msra.mxu0 0
        %579 = vmatprep.subr.bf16.mxu0 0
        %580 = vmatpush1.bf16.msra.mxu0 0
        %581 = vmatprep.subr.bf16.mxu0 0
        %582 = vmatpush1.bf16.msra.mxu0 0
        %583 = vmatprep.subr.bf16.mxu0 0
        %584 = vmatpush1.bf16.msra.mxu0 0
        %585 = vmatprep.subr.bf16.mxu0 0
        %586 = vmatpush1.bf16.msra.mxu0 0
        %587 = vmatprep.mubr.bf16.mxu0 0
        %588 = vmatmul.mubr.bf16.gmra.mrb[0].mxu0 %v483
        %v589 = vpop.f32.mrb[0].mxu0
        %v590 = vadd.f32 %v505, %v589
        %v591 = vpop.f32.mrb[0].mxu0
        %v592 = vpop.f32.mrb[0].mxu0
        %v593 = vadd.f32 %v505, %v592
        %v594 = vpop.f32.mrb[0].mxu0
        %595 = vdwg.mxu0
        %v596 = vmul.f32 %v590, %v590
        %v597 = vmul.f32 %v593, %v593
        %v598 = vmul.f32 %v590, %v596
        %v599 = vmul.f32 %v593, %v597
        %v600 = vmul.f32 %v598, 0.044715
        %v601 = vmul.f32 %v599, 0.044715
        %v602 = vadd.f32 %v590, %v600
        %v603 = vadd.f32 %v593, %v601
        %v604 = vmul.f32 %v602, 0.7978846
        %v605 = vmul.f32 %v603, 0.7978846
        %v606 = vtanh.pop %v604
        %v607 = vtanh.pop %v605
        %v608 = vadd.f32 %v606, 1.0
        %v609 = vadd.f32 %v607, 1.0
        %v610 = vmul.f32 %v608, 0.5
        %v611 = vmul.f32 %v609, 0.5
        %v612 = vmul.f32 %v590, %v610
        %v613 = vmul.f32 %v593, %v611
        %v614 = vld [vmem:[#allocation2] sm:$0xff]
        %v615 = vadd.f32 %v612, %v613
        %v616 = vadd.f32 %v614, %v615
        %617 = vst [vmem:[#allocation2] sm:$0xff] %v616
        // Predicated region
        $region69: #{tpu_custom_call.1} parent=47 // pred_check
          %p618 = pneg %p358
        $region70: #{tpu_custom_call.1} parent=47 // pred_check_branch
          %620 = sbr.rel (%p618) target = $region72
        $region71: #{tpu_custom_call.1} parent=47 // pred_region
          %v621 = vld [vmem:[#allocation2] sm:$0xff]
          %v622 = vrot.slane %v621, 4
          %v623 = vadd.f32 %v621, %v622
          %v624 = vrot.slane %v623, 2
          %v625 = vadd.f32 %v623, %v624
          %v626 = vrot.slane %v625, 1
          %v627 = vadd.f32 %v625, %v626
          %v628 = vmul.f32 %v627, 0.0625
          %v629 = vpack.c.bf16 %v628, %v628
          %v630 = vld [vmem:[#allocation9] sm:$0xf]
          %v631 = vld [vmem:[#allocation9 + $0x4] sm:$0xf]
          %v632 = vld [vmem:[#allocation9 + $0x8] sm:$0xf]
          %v633 = vld [vmem:[#allocation9 + $0xc] sm:$0xf]
          %v634 = vld [vmem:[#allocation9 + $0x10] sm:$0xf]
          %v635 = vld [vmem:[#allocation9 + $0x14] sm:$0xf]
          %v636 = vld [vmem:[#allocation9 + $0x18] sm:$0xf]
          %v637 = vld [vmem:[#allocation9 + $0x1c] sm:$0xf]
          %v638 = vld [vmem:[#allocation9 + $0x20] sm:$0xf]
          %v639 = vld [vmem:[#allocation9 + $0x24] sm:$0xf]
          %v640 = vld [vmem:[#allocation9 + $0x28] sm:$0xf]
          %v641 = vld [vmem:[#allocation9 + $0x2c] sm:$0xf]
          %v642 = vld [vmem:[#allocation9 + $0x30] sm:$0xf]
          %v643 = vld [vmem:[#allocation9 + $0x34] sm:$0xf]
          %v644 = vld [vmem:[#allocation9 + $0x38] sm:$0xf]
          %v645 = vld [vmem:[#allocation9 + $0x3c] sm:$0xf]
          %v646 = vld [vmem:[%s6] sm:$0x1]
          %v663 = vunpack.c.l.b16 %v630
          %v664 = vunpack.c.l.b16 %v631
          %v665 = vunpack.c.l.b16 %v632
          %v666 = vunpack.c.l.b16 %v633
          %v667 = vunpack.c.l.b16 %v634
          %v668 = vunpack.c.l.b16 %v635
          %v669 = vunpack.c.l.b16 %v636
          %v670 = vunpack.c.l.b16 %v637
          %v671 = vunpack.c.l.b16 %v638
          %v672 = vunpack.c.l.b16 %v639
          %v673 = vunpack.c.l.b16 %v640
          %v674 = vunpack.c.l.b16 %v641
          %v675 = vunpack.c.l.b16 %v642
          %v676 = vunpack.c.l.b16 %v643
          %v677 = vunpack.c.l.b16 %v644
          %v678 = vunpack.c.l.b16 %v645
          %v679 = vpack.c.b16 %v664, %v663
          %v680 = vpack.c.b16 %v666, %v665
          %v681 = vpack.c.b16 %v668, %v667
          %v682 = vpack.c.b16 %v670, %v669
          %v683 = vpack.c.b16 %v672, %v671
          %v684 = vpack.c.b16 %v674, %v673
          %v685 = vpack.c.b16 %v676, %v675
          %v686 = vpack.c.b16 %v678, %v677
          %695 = vmatprep.subr.bf16.mxu0 0
          %696 = vmatpush1.bf16.msra.mxu0 %v679
          %697 = vmatprep.subr.bf16.mxu0 0
          %698 = vmatpush1.bf16.msra.mxu0 %v680
          %699 = vmatprep.subr.bf16.mxu0 0
          %700 = vmatpush1.bf16.msra.mxu0 %v681
          %701 = vmatprep.subr.bf16.mxu0 0
          %702 = vmatpush1.bf16.msra.mxu0 %v682
          %703 = vmatprep.subr.bf16.mxu0 0
          %704 = vmatpush1.bf16.msra.mxu0 %v683
          %705 = vmatprep.subr.bf16.mxu0 0
          %706 = vmatpush1.bf16.msra.mxu0 %v684
          %707 = vmatprep.subr.bf16.mxu0 0
          %708 = vmatpush1.bf16.msra.mxu0 %v685
          %709 = vmatprep.subr.bf16.mxu0 0
          %710 = vmatpush1.bf16.msra.mxu0 %v686
          %711 = vmatprep.subr.bf16.mxu0 0
          %712 = vmatpush1.bf16.msra.mxu0 0
          %713 = vmatprep.subr.bf16.mxu0 0
          %714 = vmatpush1.bf16.msra.mxu0 0
          %715 = vmatprep.subr.bf16.mxu0 0
          %716 = vmatpush1.bf16.msra.mxu0 0
          %717 = vmatprep.subr.bf16.mxu0 0
          %718 = vmatpush1.bf16.msra.mxu0 0
          %719 = vmatprep.subr.bf16.mxu0 0
          %720 = vmatpush1.bf16.msra.mxu0 0
          %721 = vmatprep.subr.bf16.mxu0 0
          %722 = vmatpush1.bf16.msra.mxu0 0
          %723 = vmatprep.subr.bf16.mxu0 0
          %724 = vmatpush1.bf16.msra.mxu0 0
          %725 = vmatprep.subr.bf16.mxu0 0
          %726 = vmatpush1.bf16.msra.mxu0 0
          %727 = vmatprep.mubr.bf16.mxu0 0
          %728 = vmatmul.mubr.bf16.gmra.mrb[0].mxu0 %v629
          %v729 = vpop.f32.mrb[0].mxu0
          %v730 = vadd.f32 %v646, %v729
          %v731 = vpop.f32.mrb[0].mxu0
          %v732 = vpop.f32.mrb[0].mxu0
          %v733 = vpop.f32.mrb[0].mxu0
          %734 = vdwg.mxu0
          %735 = vst [vmem:[%s355] sm:$0x1] %v730
        $region72: #{tpu_custom_call.1} parent=47 // pred_fallthru
          _
        %s736 = sand.u32 %s200, 1
        %s737 = scalar_lea.sflag [#allocation5], %s736
        %s738 = sand.u32 %s200, 1
        %s739 = scalar_lea.vmem [#allocation11], %s738
        // Predicated region
        $region73: #{tpu_custom_call.1} parent=47 // pred_check
          %p740 = pneg %p210
        $region74: #{tpu_custom_call.1} parent=47 // pred_check_branch
          %742 = sbr.rel (%p740) target = $region76
        $region75: #{tpu_custom_call.1} parent=47 // pred_region
          %s744 = ssub.s32 16, 16
          %745 = vsyncadd %s737, %s744
          %s746 = smul.addr %s30, 16
          %s747 = scalar_lea.hbm %s7, %s746
          %s749 = sshll.u32 %s739, 4
          %s750 = int_to_ptr.vmem [resolvable:$true] %s749
          %752 = dma.vmem_to_hbm [thread:$0]  %s750, 16, %s747, %s737
        $region76: #{tpu_custom_call.1} parent=47 // pred_fallthru
          _
      $region48: #{tpu_custom_call.1} parent=5 // pred_fallthru
        _
      %p753 = scmp.le.s32.totalorder 2, %s21
      // Predicated region
      $region77: #{tpu_custom_call.1} parent=5 // pred_check
        %p754 = pneg %p753
      $region78: #{tpu_custom_call.1} parent=5 // pred_check_branch
        %756 = sbr.rel (%p754) target = $region80
      $region79: #{tpu_custom_call.1} parent=5 // pred_region
        %s757 = ssub.s32 %s21, 2
        // Predicated region
        $region81: #{tpu_custom_call.1} parent=79 // pred_check
          %p758 = pneg %p216
        $region82: #{tpu_custom_call.1} parent=79 // pred_check_branch
          %760 = sbr.rel (%p758) target = $region84
        $region83: #{tpu_custom_call.1} parent=79 // pred_region
          %s761 = sand.u32 %s201, 1
          %s762 = scalar_lea.sflag [#allocation5], %s761
          %s763 = sand.u32 %s201, 1
          %s764 = scalar_lea.vmem [#allocation11], %s763
          %765 = dma.done %s762, 16
        $region84: #{tpu_custom_call.1} parent=79 // pred_fallthru
          _
      $region80: #{tpu_custom_call.1} parent=5 // pred_fallthru
        _
    $region6: #{tpu_custom_call.1} parent=1 // loop_footer
      %s25 = sadd.s32 1, %s21
    $region7: #{tpu_custom_call.1} parent=1 // loop_footer_branch
      %20 = sbr.rel target = $region3
    $region8: #{tpu_custom_call.1} parent=1 // loop_exit
      _
    %766 = vsyncpa [#allocation4], 1
    %s767 = scalar_lea.sflag [#allocation4], 1
    %768 = vsyncpa %s767, 1
    %769 = vsyncpa [#allocation7], 1
    %770 = vsyncpa [#allocation10], 1
    %771 = vsyncpa [#allocation5], 1
    %s772 = scalar_lea.sflag [#allocation5], 1
    %773 = vsyncpa %s772, 1

// kernel: tpu_custom_call.1
$region0: #{tpu_custom_call.1}
  #allocation0 [shape = 'u32[]', space=smem, size = 0x4, offset = 0x4, fixed_abs, tag = 'smem constant byte address 0x4 - core index']
  #allocation1 [shape = 'u32[144,128]{1,0:T(1,128)}', space=vmem, size = 0x12000, scoped, tag = 'internal scratch']
  #allocation2 [shape = 'f32[8,128]{1,0:T(8,128)}', space=vmem, size = 0x1000, scoped, tag = 'scratch operand']
  %s0 = inlined_call_operand.hbm [shape: bf16[2,16,128], index: 0, kind: input, shape index: {}]
  %s1 = inlined_call_operand.hbm [shape: bf16[128,128], index: 1, kind: input, shape index: {}]
  %s2 = inlined_call_operand.vmem [shape: f32[1,128], index: 2, kind: input, shape index: {}]
  %s3 = inlined_call_operand.hbm [shape: bf16[128,128], index: 3, kind: input, shape index: {}]
  %s4 = inlined_call_operand.vmem [shape: f32[1,128], index: 4, kind: input, shape index: {}]
  %s5 = inlined_call_operand.hbm [shape: bf16[128,128], index: 5, kind: input, shape index: {}]
  %s6 = inlined_call_operand.vmem [shape: f32[1,128], index: 6, kind: input, shape index: {}]
  %s7 = inlined_call_operand.hbm [shape: f32[2,1,128], index: 7, kind: output, shape index: {}]
  %s8 = sld [smem:[#allocation0]]
  $region85: #{tpu_custom_call.1} parent=0
    _
  %s10 = ssub.s32 1, %s8
  %s11 = scalar_select 0, %s10, %s8
  $region1: #{tpu_custom_call.1} parent=0
    #allocation3 [shape = 'u8[8192]{0}', space=vmem, size = 0x2000, scoped, tag = 'input window, operand 0']
    #allocation4 [shape = 's32[2]{0}', space=sflag, size = 0x8, scoped, tag = 'scoped memory for tpu_custom_call.1']
    #allocation5 [shape = 's32[2]{0}', space=sflag, size = 0x8, scoped, tag = 'scoped memory for tpu_custom_call.1']
    #allocation6 [shape = 'u8[32768]{0}', space=vmem, size = 0x8000, scoped, tag = 'input window, operand 1, single buffered']
    #allocation7 [shape = 's32[1]{0}', space=sflag, size = 0x4, scoped, tag = 'scoped memory for tpu_custom_call.1']
    #allocation8 [shape = 'u8[32768]{0}', space=vmem, size = 0x8000, scoped, tag = 'input window, operand 3, single buffered']
    #allocation9 [shape = 'u8[32768]{0}', space=vmem, size = 0x8000, scoped, tag = 'input window, operand 5, single buffered']
    #allocation10 [shape = 's32[1]{0}', space=sflag, size = 0x4, scoped, tag = 'scoped memory for tpu_custom_call.1']
    #allocation11 [shape = 'u8[1024]{0}', space=vmem, size = 0x400, scoped, tag = 'output window, operand 0']
    %12 = vsyncpa [#allocation4], 0
    %s13 = scalar_lea.sflag [#allocation4], 1
    %14 = vsyncpa %s13, 0
    %15 = vsyncpa [#allocation7], 0
    %16 = vsyncpa [#allocation10], 0
    %17 = vsyncpa [#allocation5], 0
    %s18 = scalar_lea.sflag [#allocation5], 1
    %19 = vsyncpa %s18, 0
    loop: start=0, step=1, limit=4
    $region2: #{tpu_custom_call.1} parent=1 // loop_pre_header
      _
    $region3: #{tpu_custom_call.1} parent=1 // loop_header
      %s21 = sphi 0, %s25
      %p22 = scmp.ge.s32.totalorder %s21, 4
      %s28 = sphi 0, %s40
      %s29 = sphi 0, %s36
      %s30 = sphi 0, %s28
      %s31 = sphi 0, %s29
      %s32 = sphi 0, %s30
      %s33 = sphi 0, %s31
      %s45 = sphi 0, %s47
      %s48 = sphi 0, %s45
      %s49 = sphi 0, %s48
      %s65 = sphi 0, %s49
      %s69 = sphi 0, %s69
      %s71 = sphi 0, %s69
      %s72 = sphi 0, %s71
      %s86 = sphi 0, %s72
      %s90 = sphi 0, %s90
      %s92 = sphi 0, %s90
      %s93 = sphi 0, %s92
      %s107 = sphi 0, %s93
      %s111 = sphi 0, %s111
      %s113 = sphi 0, %s111
      %s114 = sphi 0, %s113
      %s128 = sphi 0, %s114
      %s132 = sphi 0, %s132
      %s134 = sphi 0, %s132
      %s135 = sphi 0, %s134
      %s149 = sphi 0, %s135
      %s153 = sphi 0, %s153
      %s155 = sphi 0, %s153
      %s156 = sphi 0, %s155
      %s170 = sphi 0, %s156
      %s174 = sphi 0, %s174
      %s176 = sphi 0, %s174
      %s177 = sphi 0, %s176
      %s191 = sphi 0, %s177
      %s197 = sphi 0, %s199
      %s200 = sphi 0, %s197
      %s201 = sphi 0, %s200
      %s217 = sphi 0, %s201
    $region4: #{tpu_custom_call.1} parent=1 // loop_header_branch
      %24 = sbr.rel (%p22) target = $region8
    $region5: #{tpu_custom_call.1} parent=1 // loop_body
      %s26 = ssub.s32 %s21, 1
      %s27 = ssub.s32 %s21, 2
      %s34 = sadd.s32 1, %s29
      %p35 = scmp.ge.s32.totalorder %s34, 1
      %s36 = scalar_select %p35, 0, %s34
      %s37 = sadd.s32 1, %s28
      %s38 = scalar_select %p35, %s37, %s28
      %p39 = scmp.ge.s32.totalorder %s38, 2
      %s40 = scalar_select %p39, 0, %s38
      %s41 = ssub.s32 %s28, %s40
      %s42 = ssub.s32 %s29, %s36
      %s43 = sor.u32 %s41, %s42
      %p44 = scmp.eq.s32.totalorder %s43, 0
      %s46 = sadd.s32 %s45, 1
      %s47 = scalar_select %p44, %s45, %s46
      %p50 = pneg %p44
      %p51 = scmp.eq.s32.totalorder %s21, 1
      %p52 = por %p50, %p51
      %p53 = scmp.ne.s32.totalorder %s45, %s48
      %p54 = scmp.eq.s32.totalorder %s21, 0
      %p55 = por %p53, %p54
      %p56 = scmp.ne.s32.totalorder %s45, %s48
      %p57 = scmp.eq.s32.totalorder %s26, 1
      %p58 = por %p56, %p57
      %p59 = scmp.ne.s32.totalorder %s48, %s49
      %p60 = scmp.eq.s32.totalorder %s26, 0
      %p61 = por %p59, %p60
      %p62 = scmp.ne.s32.totalorder %s48, %s49
      %p63 = scmp.eq.s32.totalorder %s27, 1
      %p64 = por %p62, %p63
      %p66 = scmp.ne.s32.totalorder %s49, %s65
      %p67 = scmp.eq.s32.totalorder %s27, 0
      %p68 = por %p66, %p67
      %s70 = sadd.s32 %s69, 1
      %p73 = scmp.eq.s32.totalorder %s21, 1
      %p74 = scmp.ne.s32.totalorder %s69, %s71
      %p75 = scmp.eq.s32.totalorder %s21, 0
      %p76 = por %p74, %p75
      %p77 = scmp.ne.s32.totalorder %s69, %s71
      %p78 = scmp.eq.s32.totalorder %s26, 1
      %p79 = por %p77, %p78
      %p80 = scmp.ne.s32.totalorder %s71, %s72
      %p81 = scmp.eq.s32.totalorder %s26, 0
      %p82 = por %p80, %p81
      %p83 = scmp.ne.s32.totalorder %s71, %s72
      %p84 = scmp.eq.s32.totalorder %s27, 1
      %p85 = por %p83, %p84
      %p87 = scmp.ne.s32.totalorder %s72, %s86
      %p88 = scmp.eq.s32.totalorder %s27, 0
      %p89 = por %p87, %p88
      %s91 = sadd.s32 %s90, 1
      %p94 = scmp.eq.s32.totalorder %s21, 1
      %p95 = scmp.ne.s32.totalorder %s90, %s92
      %p96 = scmp.eq.s32.totalorder %s21, 0
      %p97 = por %p95, %p96
      %p98 = scmp.ne.s32.totalorder %s90, %s92
      %p99 = scmp.eq.s32.totalorder %s26, 1
      %p100 = por %p98, %p99
      %p101 = scmp.ne.s32.totalorder %s92, %s93
      %p102 = scmp.eq.s32.totalorder %s26, 0
      %p103 = por %p101, %p102
      %p104 = scmp.ne.s32.totalorder %s92, %s93
      %p105 = scmp.eq.s32.totalorder %s27, 1
      %p106 = por %p104, %p105
      %p108 = scmp.ne.s32.totalorder %s93, %s107
      %p109 = scmp.eq.s32.totalorder %s27, 0
      %p110 = por %p108, %p109
      %s112 = sadd.s32 %s111, 1
      %p115 = scmp.eq.s32.totalorder %s21, 1
      %p116 = scmp.ne.s32.totalorder %s111, %s113
      %p117 = scmp.eq.s32.totalorder %s21, 0
      %p118 = por %p116, %p117
      %p119 = scmp.ne.s32.totalorder %s111, %s113
      %p120 = scmp.eq.s32.totalorder %s26, 1
      %p121 = por %p119, %p120
      %p122 = scmp.ne.s32.totalorder %s113, %s114
      %p123 = scmp.eq.s32.totalorder %s26, 0
      %p124 = por %p122, %p123
      %p125 = scmp.ne.s32.totalorder %s113, %s114
      %p126 = scmp.eq.s32.totalorder %s27, 1
      %p127 = por %p125, %p126
      %p129 = scmp.ne.s32.totalorder %s114, %s128
      %p130 = scmp.eq.s32.totalorder %s27, 0
      %p131 = por %p129, %p130
      %s133 = sadd.s32 %s132, 1
      %p136 = scmp.eq.s32.totalorder %s21, 1
      %p137 = scmp.ne.s32.totalorder %s132, %s134
      %p138 = scmp.eq.s32.totalorder %s21, 0
      %p139 = por %p137, %p138
      %p140 = scmp.ne.s32.totalorder %s132, %s134
      %p141 = scmp.eq.s32.totalorder %s26, 1
      %p142 = por %p140, %p141
      %p143 = scmp.ne.s32.totalorder %s134, %s135
      %p144 = scmp.eq.s32.totalorder %s26, 0
      %p145 = por %p143, %p144
      %p146 = scmp.ne.s32.totalorder %s134, %s135
      %p147 = scmp.eq.s32.totalorder %s27, 1
      %p148 = por %p146, %p147
      %p150 = scmp.ne.s32.totalorder %s135, %s149
      %p151 = scmp.eq.s32.totalorder %s27, 0
      %p152 = por %p150, %p151
      %s154 = sadd.s32 %s153, 1
      %p157 = scmp.eq.s32.totalorder %s21, 1
      %p158 = scmp.ne.s32.totalorder %s153, %s155
      %p159 = scmp.eq.s32.totalorder %s21, 0
      %p160 = por %p158, %p159
      %p161 = scmp.ne.s32.totalorder %s153, %s155
      %p162 = scmp.eq.s32.totalorder %s26, 1
      %p163 = por %p161, %p162
      %p164 = scmp.ne.s32.totalorder %s155, %s156
      %p165 = scmp.eq.s32.totalorder %s26, 0
      %p166 = por %p164, %p165
      %p167 = scmp.ne.s32.totalorder %s155, %s156
      %p168 = scmp.eq.s32.totalorder %s27, 1
      %p169 = por %p167, %p168
      %p171 = scmp.ne.s32.totalorder %s156, %s170
      %p172 = scmp.eq.s32.totalorder %s27, 0
      %p173 = por %p171, %p172
      %s175 = sadd.s32 %s174, 1
      %p178 = scmp.eq.s32.totalorder %s21, 1
      %p179 = scmp.ne.s32.totalorder %s174, %s176
      %p180 = scmp.eq.s32.totalorder %s21, 0
      %p181 = por %p179, %p180
      %p182 = scmp.ne.s32.totalorder %s174, %s176
      %p183 = scmp.eq.s32.totalorder %s26, 1
      %p184 = por %p182, %p183
      %p185 = scmp.ne.s32.totalorder %s176, %s177
      %p186 = scmp.eq.s32.totalorder %s26, 0
      %p187 = por %p185, %p186
      %p188 = scmp.ne.s32.totalorder %s176, %s177
      %p189 = scmp.eq.s32.totalorder %s27, 1
      %p190 = por %p188, %p189
      %p192 = scmp.ne.s32.totalorder %s177, %s191
      %p193 = scmp.eq.s32.totalorder %s27, 0
      %p194 = por %p192, %p193
      %s195 = ssub.s32 %s28, %s40
      %p196 = scmp.eq.s32.totalorder %s195, 0
      %s198 = sadd.s32 %s197, 1
      %s199 = scalar_select %p196, %s197, %s198
      %p202 = pneg %p196
      %p203 = scmp.eq.s32.totalorder %s21, 1
      %p204 = por %p202, %p203
      %p205 = scmp.ne.s32.totalorder %s197, %s200
      %p206 = scmp.eq.s32.totalorder %s21, 0
      %p207 = por %p205, %p206
      %p208 = scmp.ne.s32.totalorder %s197, %s200
      %p209 = scmp.eq.s32.totalorder %s26, 1
      %p210 = por %p208, %p209
      %p211 = scmp.ne.s32.totalorder %s200, %s201
      %p212 = scmp.eq.s32.totalorder %s26, 0
      %p213 = por %p211, %p212
      %p214 = scmp.ne.s32.totalorder %s200, %s201
      %p215 = scmp.eq.s32.totalorder %s27, 1
      %p216 = por %p214, %p215
      %p218 = scmp.ne.s32.totalorder %s201, %s217
      %p219 = scmp.eq.s32.totalorder %s27, 0
      %p220 = por %p218, %p219
      %p221 = scmp.le.s32.totalorder 1, %s21
      %p222 = scmp.lt.s32.totalorder %s21, 3
      %p223 = pnand %p221, %p222
      %p224 = pneg %p223
      // Predicated region
      $region9: #{tpu_custom_call.1} parent=5 // pred_check
        _
      $region10: #{tpu_custom_call.1} parent=5 // pred_check_branch
        %226 = sbr.rel (%p223) target = $region12
      $region11: #{tpu_custom_call.1} parent=5 // pred_region
        %s227 = ssub.s32 %s21, 1
        // Predicated region
        $region13: #{tpu_custom_call.1} parent=11 // pred_check
          %p228 = pneg %p82
        $region14: #{tpu_custom_call.1} parent=11 // pred_check_branch
          %230 = sbr.rel (%p228) target = $region16
        $region15: #{tpu_custom_call.1} parent=11 // pred_region
          %s232 = ssub.s32 1024, 1024
          %233 = vsyncadd [#allocation7], %s232
          %s234 = sshll.u32 [#allocation6], 4
          %s235 = int_to_ptr.vmem [resolvable:$true] %s234
          %240 = dma.hbm_to_vmem [thread:$0]  %s1, 1024, %s235, [#allocation7], 64, 64, 4
        $region16: #{tpu_custom_call.1} parent=11 // pred_fallthru
          _
        // Predicated region
        $region17: #{tpu_custom_call.1} parent=11 // pred_check
          %p241 = pneg %p103
        $region18: #{tpu_custom_call.1} parent=11 // pred_check_branch
          %243 = sbr.rel (%p241) target = $region20
        $region19: #{tpu_custom_call.1} parent=11 // pred_region
          _
        $region20: #{tpu_custom_call.1} parent=11 // pred_fallthru
          _
        // Predicated region
        $region21: #{tpu_custom_call.1} parent=11 // pred_check
          %p244 = pneg %p124
        $region22: #{tpu_custom_call.1} parent=11 // pred_check_branch
          %246 = sbr.rel (%p244) target = $region24
        $region23: #{tpu_custom_call.1} parent=11 // pred_region
          %s248 = ssub.s32 1024, 1024
          %249 = vsyncadd [#allocation7], %s248
          %s250 = sshll.u32 [#allocation8], 4
          %s251 = int_to_ptr.vmem [resolvable:$true] %s250
          %256 = dma.hbm_to_vmem [thread:$0]  %s3, 1024, %s251, [#allocation7], 64, 64, 4
        $region24: #{tpu_custom_call.1} parent=11 // pred_fallthru
          _
        // Predicated region
        $region25: #{tpu_custom_call.1} parent=11 // pred_check
          %p257 = pneg %p145
        $region26: #{tpu_custom_call.1} parent=11 // pred_check_branch
          %259 = sbr.rel (%p257) target = $region28
        $region27: #{tpu_custom_call.1} parent=11 // pred_region
          _
        $region28: #{tpu_custom_call.1} parent=11 // pred_fallthru
          _
        // Predicated region
        $region29: #{tpu_custom_call.1} parent=11 // pred_check
          %p260 = pneg %p166
        $region30: #{tpu_custom_call.1} parent=11 // pred_check_branch
          %262 = sbr.rel (%p260) target = $region32
        $region31: #{tpu_custom_call.1} parent=11 // pred_region
          %s264 = ssub.s32 1024, 1024
          %265 = vsyncadd [#allocation10], %s264
          %s266 = sshll.u32 [#allocation9], 4
          %s267 = int_to_ptr.vmem [resolvable:$true] %s266
          %272 = dma.hbm_to_vmem [thread:$0]  %s5, 1024, %s267, [#allocation10], 64, 64, 4
        $region32: #{tpu_custom_call.1} parent=11 // pred_fallthru
          _
        // Predicated region
        $region33: #{tpu_custom_call.1} parent=11 // pred_check
          %p273 = pneg %p187
        $region34: #{tpu_custom_call.1} parent=11 // pred_check_branch
          %275 = sbr.rel (%p273) target = $region36
        $region35: #{tpu_custom_call.1} parent=11 // pred_region
          _
        $region36: #{tpu_custom_call.1} parent=11 // pred_fallthru
          _
      $region12: #{tpu_custom_call.1} parent=5 // pred_fallthru
        _
      %p276 = scmp.lt.s32.totalorder %s21, 2
      // Predicated region
      $region37: #{tpu_custom_call.1} parent=5 // pred_check
        %p277 = pneg %p276
      $region38: #{tpu_custom_call.1} parent=5 // pred_check_branch
        %279 = sbr.rel (%p277) target = $region40
      $region39: #{tpu_custom_call.1} parent=5 // pred_region
        // Predicated region
        $region41: #{tpu_custom_call.1} parent=39 // pred_check
          %p280 = pneg %p55
        $region42: #{tpu_custom_call.1} parent=39 // pred_check_branch
          %282 = sbr.rel (%p280) target = $region44
        $region43: #{tpu_custom_call.1} parent=39 // pred_region
          %s283 = sand.u32 %s45, 1
          %s284 = scalar_lea.sflag [#allocation4], %s283
          %s285 = sand.u32 %s45, 1
          %s286 = smul.addr %s285, 8
          %s287 = scalar_lea.vmem [#allocation3], %s286
          %s288 = smul.u32 2, %s29
          %s290 = ssub.s32 128, 128
          %291 = vsyncadd %s284, %s290
          %s292 = smul.addr %s28, 2
          %s293 = sadd.s32 %s288, %s292
          %s294 = smul.addr %s293, 64
          %s295 = scalar_lea.hbm %s0, %s294
          %s296 = sshll.u32 %s287, 4
          %s297 = int_to_ptr.vmem [resolvable:$true] %s296
          %302 = dma.hbm_to_vmem [thread:$0]  %s295, 128, %s297, %s284, 64, 64, 4
        $region44: #{tpu_custom_call.1} parent=39 // pred_fallthru
          _
      $region40: #{tpu_custom_call.1} parent=5 // pred_fallthru
        _
      %p303 = scmp.le.s32.totalorder 1, %s21
      %p304 = scmp.lt.s32.totalorder %s21, 3
      %p305 = pnand %p303, %p304
      %p306 = pneg %p305
      // Predicated region
      $region45: #{tpu_custom_call.1} parent=5 // pred_check
        _
      $region46: #{tpu_custom_call.1} parent=5 // pred_check_branch
        %308 = sbr.rel (%p305) target = $region48
      $region47: #{tpu_custom_call.1} parent=5 // pred_region
        %s309 = ssub.s32 %s21, 1
        %s310 = sand.u32 %s48, 1
        %s311 = scalar_lea.sflag [#allocation4], %s310
        %s312 = sand.u32 %s48, 1
        %s313 = smul.addr %s312, 8
        %s314 = scalar_lea.vmem [#allocation3], %s313
        // Predicated region
        $region49: #{tpu_custom_call.1} parent=47 // pred_check
          %p315 = pneg %p61
        $region50: #{tpu_custom_call.1} parent=47 // pred_check_branch
          %317 = sbr.rel (%p315) target = $region52
        $region51: #{tpu_custom_call.1} parent=47 // pred_region
          %318 = dma.done %s311, 128
        $region52: #{tpu_custom_call.1} parent=47 // pred_fallthru
          _
        // Predicated region
        $region53: #{tpu_custom_call.1} parent=47 // pred_check
          %p319 = pneg %p82
        $region54: #{tpu_custom_call.1} parent=47 // pred_check_branch
          %321 = sbr.rel (%p319) target = $region56
        $region55: #{tpu_custom_call.1} parent=47 // pred_region
          %322 = dma.done [#allocation7], 1024
        $region56: #{tpu_custom_call.1} parent=47 // pred_fallthru
          _
        // Predicated region
        $region57: #{tpu_custom_call.1} parent=47 // pred_check
          %p323 = pneg %p124
        $region58: #{tpu_custom_call.1} parent=47 // pred_check_branch
          %325 = sbr.rel (%p323) target = $region60
        $region59: #{tpu_custom_call.1} parent=47 // pred_region
          %326 = dma.done [#allocation7], 1024
        $region60: #{tpu_custom_call.1} parent=47 // pred_fallthru
          _
        // Predicated region
        $region61: #{tpu_custom_call.1} parent=47 // pred_check
          %p327 = pneg %p166
        $region62: #{tpu_custom_call.1} parent=47 // pred_check_branch
          %329 = sbr.rel (%p327) target = $region64
        $region63: #{tpu_custom_call.1} parent=47 // pred_region
          %330 = dma.done [#allocation10], 1024
        $region64: #{tpu_custom_call.1} parent=47 // pred_fallthru
          _
        %s331 = sand.u32 %s48, 1
        %s332 = scalar_lea.sflag [#allocation4], %s331
        %s333 = sand.u32 %s48, 1
        %s334 = smul.addr %s333, 8
        %s335 = scalar_lea.vmem [#allocation3], %s334
        %p336 = pneg %p61
        %p337 = pneg %p58
        %p338 = pneg %p82
        %p339 = pneg %p79
        %p340 = pneg %p103
        %p341 = pneg %p100
        %p342 = pneg %p124
        %p343 = pneg %p121
        %p344 = pneg %p145
        %p345 = pneg %p142
        %p346 = pneg %p166
        %p347 = pneg %p163
        %p348 = pneg %p187
        %p349 = pneg %p184
        %p350 = pneg %p213
        %p351 = pneg %p210
        %s352 = sand.u32 %s200, 1
        %s353 = scalar_lea.sflag [#allocation5], %s352
        %s354 = sand.u32 %s200, 1
        %s355 = scalar_lea.vmem [#allocation11], %s354
        %s356 = smul.u32 2, %s31
        %p358 = scmp.eq.s32.totalorder %s31, 0
        // Predicated region
        $region65: #{tpu_custom_call.1} parent=47 // pred_check
          %p359 = pneg %p358
        $region66: #{tpu_custom_call.1} parent=47 // pred_check_branch
          %361 = sbr.rel (%p359) target = $region68
        $region67: #{tpu_custom_call.1} parent=47 // pred_region
          %362 = vst [vmem:[#allocation2] sm:$0xff] 0.0
        $region68: #{tpu_custom_call.1} parent=47 // pred_fallthru
          _
        %v363 = vld [vmem:[%s314] sm:$0xf]
        %v364 = vld [vmem:[%s314 + $0x4] sm:$0xf]
        %v365 = vld [vmem:[#allocation6] sm:$0xf]
        %v366 = vld [vmem:[#allocation6 + $0x4] sm:$0xf]
        %v367 = vld [vmem:[#allocation6 + $0x8] sm:$0xf]
        %v368 = vld [vmem:[#allocation6 + $0xc] sm:$0xf]
        %v369 = vld [vmem:[#allocation6 + $0x10] sm:$0xf]
        %v370 = vld [vmem:[#allocation6 + $0x14] sm:$0xf]
        %v371 = vld [vmem:[#allocation6 + $0x18] sm:$0xf]
        %v372 = vld [vmem:[#allocation6 + $0x1c] sm:$0xf]
        %v373 = vld [vmem:[#allocation6 + $0x20] sm:$0xf]
        %v374 = vld [vmem:[#allocation6 + $0x24] sm:$0xf]
        %v375 = vld [vmem:[#allocation6 + $0x28] sm:$0xf]
        %v376 = vld [vmem:[#allocation6 + $0x2c] sm:$0xf]
        %v377 = vld [vmem:[#allocation6 + $0x30] sm:$0xf]
        %v378 = vld [vmem:[#allocation6 + $0x34] sm:$0xf]
        %v379 = vld [vmem:[#allocation6 + $0x38] sm:$0xf]
        %v380 = vld [vmem:[#allocation6 + $0x3c] sm:$0xf]
        %v381 = vld [vmem:[%s2] sm:$0x1]
        %v383 = vlaneseq
        %v384 = vshrl.u32 %v383, 7
        %v385 = vsub.s32 0, %v384
        %v386 = vrot.slane %v381, %v385
        %v390 = vunpack.c.l.b16 %v363
        %v391 = vunpack.c.l.b16 %v364
        %v392 = vpack.c.b16 %v391, %v390
        %v410 = vunpack.c.l.b16 %v365
        %v411 = vunpack.c.l.b16 %v366
        %v412 = vunpack.c.l.b16 %v367
        %v413 = vunpack.c.l.b16 %v368
        %v414 = vunpack.c.l.b16 %v369
        %v415 = vunpack.c.l.b16 %v370
        %v416 = vunpack.c.l.b16 %v371
        %v417 = vunpack.c.l.b16 %v372
        %v418 = vunpack.c.l.b16 %v373
        %v419 = vunpack.c.l.b16 %v374
        %v420 = vunpack.c.l.b16 %v375
        %v421 = vunpack.c.l.b16 %v376
        %v422 = vunpack.c.l.b16 %v377
        %v423 = vunpack.c.l.b16 %v378
        %v424 = vunpack.c.l.b16 %v379
        %v425 = vunpack.c.l.b16 %v380
        %v426 = vpack.c.b16 %v411, %v410
        %v427 = vpack.c.b16 %v413, %v412
        %v428 = vpack.c.b16 %v415, %v414
        %v429 = vpack.c.b16 %v417, %v416
        %v430 = vpack.c.b16 %v419, %v418
        %v431 = vpack.c.b16 %v421, %v420
        %v432 = vpack.c.b16 %v423, %v422
        %v433 = vpack.c.b16 %v425, %v424
        %442 = vmatprep.subr.bf16.mxu0 0
        %443 = vmatpush1.bf16.msra.mxu0 %v426
        %444 = vmatprep.subr.bf16.mxu0 0
        %445 = vmatpush1.bf16.msra.mxu0 %v427
        %446 = vmatprep.subr.bf16.mxu0 0
        %447 = vmatpush1.bf16.msra.mxu0 %v428
        %448 = vmatprep.subr.bf16.mxu0 0
        %449 = vmatpush1.bf16.msra.mxu0 %v429
        %450 = vmatprep.subr.bf16.mxu0 0
        %451 = vmatpush1.bf16.msra.mxu0 %v430
        %452 = vmatprep.subr.bf16.mxu0 0
        %453 = vmatpush1.bf16.msra.mxu0 %v431
        %454 = vmatprep.subr.bf16.mxu0 0
        %455 = vmatpush1.bf16.msra.mxu0 %v432
        %456 = vmatprep.subr.bf16.mxu0 0
        %457 = vmatpush1.bf16.msra.mxu0 %v433
        %458 = vmatprep.subr.bf16.mxu0 0
        %459 = vmatpush1.bf16.msra.mxu0 0
        %460 = vmatprep.subr.bf16.mxu0 0
        %461 = vmatpush1.bf16.msra.mxu0 0
        %462 = vmatprep.subr.bf16.mxu0 0
        %463 = vmatpush1.bf16.msra.mxu0 0
        %464 = vmatprep.subr.bf16.mxu0 0
        %465 = vmatpush1.bf16.msra.mxu0 0
        %466 = vmatprep.subr.bf16.mxu0 0
        %467 = vmatpush1.bf16.msra.mxu0 0
        %468 = vmatprep.subr.bf16.mxu0 0
        %469 = vmatpush1.bf16.msra.mxu0 0
        %470 = vmatprep.subr.bf16.mxu0 0
        %471 = vmatpush1.bf16.msra.mxu0 0
        %472 = vmatprep.subr.bf16.mxu0 0
        %473 = vmatpush1.bf16.msra.mxu0 0
        %474 = vmatprep.mubr.bf16.mxu0 0
        %475 = vmatmul.mubr.bf16.gmra.mrb[0].mxu0 %v392
        %v476 = vpop.f32.mrb[0].mxu0
        %v477 = vadd.f32 %v386, %v476
        %v478 = vpop.f32.mrb[0].mxu0
        %v479 = vpop.f32.mrb[0].mxu0
        %v480 = vadd.f32 %v386, %v479
        %v481 = vpop.f32.mrb[0].mxu0
        %482 = vdwg.mxu0
        %v483 = vpack.c.bf16 %v480, %v477
        %v484 = vld [vmem:[#allocation8] sm:$0xf]
        %v485 = vld [vmem:[#allocation8 + $0x4] sm:$0xf]
        %v486 = vld [vmem:[#allocation8 + $0x8] sm:$0xf]
        %v487 = vld [vmem:[#allocation8 + $0xc] sm:$0xf]
        %v488 = vld [vmem:[#allocation8 + $0x10] sm:$0xf]
        %v489 = vld [vmem:[#allocation8 + $0x14] sm:$0xf]
        %v490 = vld [vmem:[#allocation8 + $0x18] sm:$0xf]
        %v491 = vld [vmem:[#allocation8 + $0x1c] sm:$0xf]
        %v492 = vld [vmem:[#allocation8 + $0x20] sm:$0xf]
        %v493 = vld [vmem:[#allocation8 + $0x24] sm:$0xf]
        %v494 = vld [vmem:[#allocation8 + $0x28] sm:$0xf]
        %v495 = vld [vmem:[#allocation8 + $0x2c] sm:$0xf]
        %v496 = vld [vmem:[#allocation8 + $0x30] sm:$0xf]
        %v497 = vld [vmem:[#allocation8 + $0x34] sm:$0xf]
        %v498 = vld [vmem:[#allocation8 + $0x38] sm:$0xf]
        %v499 = vld [vmem:[#allocation8 + $0x3c] sm:$0xf]
        %v500 = vld [vmem:[%s4] sm:$0x1]
        %v502 = vlaneseq
        %v503 = vshrl.u32 %v502, 7
        %v504 = vsub.s32 0, %v503
        %v505 = vrot.slane %v500, %v504
        %v523 = vunpack.c.l.b16 %v484
        %v524 = vunpack.c.l.b16 %v485
        %v525 = vunpack.c.l.b16 %v486
        %v526 = vunpack.c.l.b16 %v487
        %v527 = vunpack.c.l.b16 %v488
        %v528 = vunpack.c.l.b16 %v489
        %v529 = vunpack.c.l.b16 %v490
        %v530 = vunpack.c.l.b16 %v491
        %v531 = vunpack.c.l.b16 %v492
        %v532 = vunpack.c.l.b16 %v493
        %v533 = vunpack.c.l.b16 %v494
        %v534 = vunpack.c.l.b16 %v495
        %v535 = vunpack.c.l.b16 %v496
        %v536 = vunpack.c.l.b16 %v497
        %v537 = vunpack.c.l.b16 %v498
        %v538 = vunpack.c.l.b16 %v499
        %v539 = vpack.c.b16 %v524, %v523
        %v540 = vpack.c.b16 %v526, %v525
        %v541 = vpack.c.b16 %v528, %v527
        %v542 = vpack.c.b16 %v530, %v529
        %v543 = vpack.c.b16 %v532, %v531
        %v544 = vpack.c.b16 %v534, %v533
        %v545 = vpack.c.b16 %v536, %v535
        %v546 = vpack.c.b16 %v538, %v537
        %555 = vmatprep.subr.bf16.mxu0 0
        %556 = vmatpush1.bf16.msra.mxu0 %v539
        %557 = vmatprep.subr.bf16.mxu0 0
        %558 = vmatpush1.bf16.msra.mxu0 %v540
        %559 = vmatprep.subr.bf16.mxu0 0
        %560 = vmatpush1.bf16.msra.mxu0 %v541
        %561 = vmatprep.subr.bf16.mxu0 0
        %562 = vmatpush1.bf16.msra.mxu0 %v542
        %563 = vmatprep.subr.bf16.mxu0 0
        %564 = vmatpush1.bf16.msra.mxu0 %v543
        %565 = vmatprep.subr.bf16.mxu0 0
        %566 = vmatpush1.bf16.msra.mxu0 %v544
        %567 = vmatprep.subr.bf16.mxu0 0
        %568 = vmatpush1.bf16.msra.mxu0 %v545
        %569 = vmatprep.subr.bf16.mxu0 0
        %570 = vmatpush1.bf16.msra.mxu0 %v546
        %571 = vmatprep.subr.bf16.mxu0 0
        %572 = vmatpush1.bf16.msra.mxu0 0
        %573 = vmatprep.subr.bf16.mxu0 0
        %574 = vmatpush1.bf16.msra.mxu0 0
        %575 = vmatprep.subr.bf16.mxu0 0
        %576 = vmatpush1.bf16.msra.mxu0 0
        %577 = vmatprep.subr.bf16.mxu0 0
        %578 = vmatpush1.bf16.msra.mxu0 0
        %579 = vmatprep.subr.bf16.mxu0 0
        %580 = vmatpush1.bf16.msra.mxu0 0
        %581 = vmatprep.subr.bf16.mxu0 0
        %582 = vmatpush1.bf16.msra.mxu0 0
        %583 = vmatprep.subr.bf16.mxu0 0
        %584 = vmatpush1.bf16.msra.mxu0 0
        %585 = vmatprep.subr.bf16.mxu0 0
        %586 = vmatpush1.bf16.msra.mxu0 0
        %587 = vmatprep.mubr.bf16.mxu0 0
        %588 = vmatmul.mubr.bf16.gmra.mrb[0].mxu0 %v483
        %v589 = vpop.f32.mrb[0].mxu0
        %v590 = vadd.f32 %v505, %v589
        %v591 = vpop.f32.mrb[0].mxu0
        %v592 = vpop.f32.mrb[0].mxu0
        %v593 = vadd.f32 %v505, %v592
        %v594 = vpop.f32.mrb[0].mxu0
        %595 = vdwg.mxu0
        %v596 = vmul.f32 %v590, %v590
        %v597 = vmul.f32 %v593, %v593
        %v598 = vmul.f32 %v590, %v596
        %v599 = vmul.f32 %v593, %v597
        %v600 = vmul.f32 %v598, 0.044715
        %v601 = vmul.f32 %v599, 0.044715
        %v602 = vadd.f32 %v590, %v600
        %v603 = vadd.f32 %v593, %v601
        %v604 = vmul.f32 %v602, 0.7978846
        %v605 = vmul.f32 %v603, 0.7978846
        %v606 = vtanh.pop %v604
        %v607 = vtanh.pop %v605
        %v608 = vadd.f32 %v606, 1.0
        %v609 = vadd.f32 %v607, 1.0
        %v610 = vmul.f32 %v608, 0.5
        %v611 = vmul.f32 %v609, 0.5
        %v612 = vmul.f32 %v590, %v610
        %v613 = vmul.f32 %v593, %v611
        %v614 = vld [vmem:[#allocation2] sm:$0xff]
        %v615 = vadd.f32 %v612, %v613
        %v616 = vadd.f32 %v614, %v615
        %617 = vst [vmem:[#allocation2] sm:$0xff] %v616
        // Predicated region
        $region69: #{tpu_custom_call.1} parent=47 // pred_check
          %p618 = pneg %p358
        $region70: #{tpu_custom_call.1} parent=47 // pred_check_branch
          %620 = sbr.rel (%p618) target = $region72
        $region71: #{tpu_custom_call.1} parent=47 // pred_region
          %v621 = vld [vmem:[#allocation2] sm:$0xff]
          %v622 = vrot.slane %v621, 4
          %v623 = vadd.f32 %v621, %v622
          %v624 = vrot.slane %v623, 2
          %v625 = vadd.f32 %v623, %v624
          %v626 = vrot.slane %v625, 1
          %v627 = vadd.f32 %v625, %v626
          %v628 = vmul.f32 %v627, 0.0625
          %v629 = vpack.c.bf16 %v628, %v628
          %v630 = vld [vmem:[#allocation9] sm:$0xf]
          %v631 = vld [vmem:[#allocation9 + $0x4] sm:$0xf]
          %v632 = vld [vmem:[#allocation9 + $0x8] sm:$0xf]
          %v633 = vld [vmem:[#allocation9 + $0xc] sm:$0xf]
          %v634 = vld [vmem:[#allocation9 + $0x10] sm:$0xf]
          %v635 = vld [vmem:[#allocation9 + $0x14] sm:$0xf]
          %v636 = vld [vmem:[#allocation9 + $0x18] sm:$0xf]
          %v637 = vld [vmem:[#allocation9 + $0x1c] sm:$0xf]
          %v638 = vld [vmem:[#allocation9 + $0x20] sm:$0xf]
          %v639 = vld [vmem:[#allocation9 + $0x24] sm:$0xf]
          %v640 = vld [vmem:[#allocation9 + $0x28] sm:$0xf]
          %v641 = vld [vmem:[#allocation9 + $0x2c] sm:$0xf]
          %v642 = vld [vmem:[#allocation9 + $0x30] sm:$0xf]
          %v643 = vld [vmem:[#allocation9 + $0x34] sm:$0xf]
          %v644 = vld [vmem:[#allocation9 + $0x38] sm:$0xf]
          %v645 = vld [vmem:[#allocation9 + $0x3c] sm:$0xf]
          %v646 = vld [vmem:[%s6] sm:$0x1]
          %v663 = vunpack.c.l.b16 %v630
          %v664 = vunpack.c.l.b16 %v631
          %v665 = vunpack.c.l.b16 %v632
          %v666 = vunpack.c.l.b16 %v633
          %v667 = vunpack.c.l.b16 %v634
          %v668 = vunpack.c.l.b16 %v635
          %v669 = vunpack.c.l.b16 %v636
          %v670 = vunpack.c.l.b16 %v637
          %v671 = vunpack.c.l.b16 %v638
          %v672 = vunpack.c.l.b16 %v639
          %v673 = vunpack.c.l.b16 %v640
          %v674 = vunpack.c.l.b16 %v641
          %v675 = vunpack.c.l.b16 %v642
          %v676 = vunpack.c.l.b16 %v643
          %v677 = vunpack.c.l.b16 %v644
          %v678 = vunpack.c.l.b16 %v645
          %v679 = vpack.c.b16 %v664, %v663
          %v680 = vpack.c.b16 %v666, %v665
          %v681 = vpack.c.b16 %v668, %v667
          %v682 = vpack.c.b16 %v670, %v669
          %v683 = vpack.c.b16 %v672, %v671
          %v684 = vpack.c.b16 %v674, %v673
          %v685 = vpack.c.b16 %v676, %v675
          %v686 = vpack.c.b16 %v678, %v677
          %695 = vmatprep.subr.bf16.mxu0 0
          %696 = vmatpush1.bf16.msra.mxu0 %v679
          %697 = vmatprep.subr.bf16.mxu0 0
          %698 = vmatpush1.bf16.msra.mxu0 %v680
          %699 = vmatprep.subr.bf16.mxu0 0
          %700 = vmatpush1.bf16.msra.mxu0 %v681
          %701 = vmatprep.subr.bf16.mxu0 0
          %702 = vmatpush1.bf16.msra.mxu0 %v682
          %703 = vmatprep.subr.bf16.mxu0 0
          %704 = vmatpush1.bf16.msra.mxu0 %v683
          %705 = vmatprep.subr.bf16.mxu0 0
          %706 = vmatpush1.bf16.msra.mxu0 %v684
          %707 = vmatprep.subr.bf16.mxu0 0
          %708 = vmatpush1.bf16.msra.mxu0 %v685
          %709 = vmatprep.subr.bf16.mxu0 0
          %710 = vmatpush1.bf16.msra.mxu0 %v686
          %711 = vmatprep.subr.bf16.mxu0 0
          %712 = vmatpush1.bf16.msra.mxu0 0
          %713 = vmatprep.subr.bf16.mxu0 0
          %714 = vmatpush1.bf16.msra.mxu0 0
          %715 = vmatprep.subr.bf16.mxu0 0
          %716 = vmatpush1.bf16.msra.mxu0 0
          %717 = vmatprep.subr.bf16.mxu0 0
          %718 = vmatpush1.bf16.msra.mxu0 0
          %719 = vmatprep.subr.bf16.mxu0 0
          %720 = vmatpush1.bf16.msra.mxu0 0
          %721 = vmatprep.subr.bf16.mxu0 0
          %722 = vmatpush1.bf16.msra.mxu0 0
          %723 = vmatprep.subr.bf16.mxu0 0
          %724 = vmatpush1.bf16.msra.mxu0 0
          %725 = vmatprep.subr.bf16.mxu0 0
          %726 = vmatpush1.bf16.msra.mxu0 0
          %727 = vmatprep.mubr.bf16.mxu0 0
          %728 = vmatmul.mubr.bf16.gmra.mrb[0].mxu0 %v629
          %v729 = vpop.f32.mrb[0].mxu0
          %v730 = vadd.f32 %v646, %v729
          %v731 = vpop.f32.mrb[0].mxu0
          %v732 = vpop.f32.mrb[0].mxu0
          %v733 = vpop.f32.mrb[0].mxu0
          %734 = vdwg.mxu0
          %735 = vst [vmem:[%s355] sm:$0x1] %v730
        $region72: #{tpu_custom_call.1} parent=47 // pred_fallthru
          _
        %s736 = sand.u32 %s200, 1
        %s737 = scalar_lea.sflag [#allocation5], %s736
        %s738 = sand.u32 %s200, 1
        %s739 = scalar_lea.vmem [#allocation11], %s738
        // Predicated region
        $region73: #{tpu_custom_call.1} parent=47 // pred_check
          %p740 = pneg %p210
        $region74: #{tpu_custom_call.1} parent=47 // pred_check_branch
          %742 = sbr.rel (%p740) target = $region76
        $region75: #{tpu_custom_call.1} parent=47 // pred_region
          %s744 = ssub.s32 16, 16
          %745 = vsyncadd %s737, %s744
          %s746 = smul.addr %s30, 16
          %s747 = scalar_lea.hbm %s7, %s746
          %s749 = sshll.u32 %s739, 4
          %s750 = int_to_ptr.vmem [resolvable:$true] %s749
          %752 = dma.vmem_to_hbm [thread:$0]  %s750, 16, %s747, %s737
        $region76: #{tpu_custom_call.1} parent=47 // pred_fallthru
          _
      $region48: #{tpu_custom_call.1} parent=5 // pred_fallthru
        _
      %p753 = scmp.le.s32.totalorder 2, %s21
      // Predicated region
      $region77: #{tpu_custom_call.1} parent=5 // pred_check
        %p754 = pneg %p753
      $region78: #{tpu_custom_call.1} parent=5 // pred_check_branch
        %756 = sbr.rel (%p754) target = $region80
      $region79: #{tpu_custom_call.1} parent=5 // pred_region
        %s757 = ssub.s32 %s21, 2
        // Predicated region
        $region81: #{tpu_custom_call.1} parent=79 // pred_check
          %p758 = pneg %p216
        $region82: #{tpu_custom_call.1} parent=79 // pred_check_branch
          %760 = sbr.rel (%p758) target = $region84
        $region83: #{tpu_custom_call.1} parent=79 // pred_region
          %s761 = sand.u32 %s201, 1
          %s762 = scalar_lea.sflag [#allocation5], %s761
          %s763 = sand.u32 %s201, 1
          %s764 = scalar_lea.vmem [#allocation11], %s763
          %765 = dma.done %s762, 16
        $region84: #{tpu_custom_call.1} parent=79 // pred_fallthru
          _
      $region80: #{tpu_custom_call.1} parent=5 // pred_fallthru
        _
    $region6: #{tpu_custom_call.1} parent=1 // loop_footer
      %s25 = sadd.s32 1, %s21
    $region7: #{tpu_custom_call.1} parent=1 // loop_footer_branch
      %20 = sbr.rel target = $region3
    $region8: #{tpu_custom_call.1} parent=1 // loop_exit
      _
    %766 = vsyncpa [#allocation4], 1
    %s767 = scalar_lea.sflag [#allocation4], 1
    %768 = vsyncpa %s767, 1
    %769 = vsyncpa [#allocation7], 1
    %770 = vsyncpa [#allocation10], 1
    %771 = vsyncpa [#allocation5], 1
    %s772 = scalar_lea.sflag [#allocation5], 1
    %773 = vsyncpa %s772, 1

</llo_original>
